<compile_context>
chip_gen: v7x
topology: tpu7x:2x2x1
jax: 0.10.0
libtpu: 0.0.40
codegen_flags: <defaults>
</compile_context>

<pallas_src>
import functools

import numpy as np
import jax
import jax.numpy as jnp
from jax.experimental import pallas as pl
from jax.experimental.pallas import tpu as pltpu


def _round_up(x, m):
    return ((x + m - 1) // m) * m


# ----------------------------------------------------------------------------
# Parameter generation (DiffuseShader.__init__ -> self.vecs, shape (25, 3))
# ----------------------------------------------------------------------------
def generate_hemisphere(r=1.0, samples=(5j, 5j)):
    u, v = np.mgrid[0:np.pi:samples[0], 0:np.pi:samples[1]]
    x = (r * np.cos(u) * np.sin(v)).flatten()
    y = (r * np.sin(u) * np.sin(v)).flatten()
    z = (r * np.cos(v)).flatten()
    return jnp.asarray(np.c_[x, y, z], dtype=jnp.float32)


# ----------------------------------------------------------------------------
# JAX glue: project the hemisphere samples into global space (tiny 3x3 math)
# ----------------------------------------------------------------------------
def project_hemisphere_projection(vecs, p, l):
    NP = p.shape[0]
    S = vecs.shape[0]
    u = l[None, :] - p                                   # (NP, 3)
    u_norm = jnp.linalg.norm(u, axis=1)
    p_local = jnp.zeros_like(u).at[:, 1].set(u_norm)
    v = -p_local
    u = u / u_norm[:, None]
    v = v / jnp.linalg.norm(v, axis=1)[:, None]
    c = jnp.sum(v * u, axis=1)[:, None]                  # diag(v @ u.T)
    w = jnp.cross(v, u, axis=-1)
    z = jnp.zeros((NP,), jnp.float32)
    vmat = jnp.stack([
        jnp.stack([z, -w[:, 2], w[:, 1]], axis=1),
        jnp.stack([w[:, 2], z, -w[:, 0]], axis=1),
        jnp.stack([-w[:, 1], w[:, 0], z], axis=1),
    ], axis=1)                                           # (NP, 3, 3)
    FFF = (1.0 + c)[:, :, None]
    R = jnp.eye(3, dtype=jnp.float32)[None] + vmat + jnp.matmul(vmat, vmat) / FFF
    V25 = jnp.broadcast_to(vecs.T[None], (NP, 3, S))
    RV = jnp.matmul(R, V25)                              # (NP, 3, S)
    T = jnp.broadcast_to(l[None, :, None], (NP, 3, S))
    return jnp.transpose(RV + T, (0, 2, 1))              # (NP, S, 3)


# ----------------------------------------------------------------------------
# Fused Pallas kernel: intersection + visibility + sun/shadow + shading
#
# Per-point lane layout: element q = i*S + j of the reference's scrambled view
# t.view(NP, NS, S); the same q equals the flat index r*NS + c of the original
# (sample r, surface c) pair, so t is produced directly in this layout.
# ----------------------------------------------------------------------------
def _fused_shade_kernel(pt_ref, dstk_ref, full_ref, numtab_ref, wd_ref,
                        eexp_ref, g_ref, out_ref, counts_ref, *, s_samples):
    k = pl.program_id(1)

    @pl.when(k == 0)
    def _():
        counts_ref[...] = jnp.zeros_like(counts_ref)

    # numerator (k - p.vn): one K=16 MXU matmul (pt cols 0..3 = [1, -p]).
    num = jnp.dot(pt_ref[...], numtab_ref[...], preferred_element_type=jnp.float32)
    # direction.vn expanded over all (sample, surface) pairs: K=128 MXU matmul.
    vd = jnp.dot(dstk_ref[...], wd_ref[...], preferred_element_type=jnp.float32)
    # t = num / vd via EUP reciprocal (feeds the threshold tests only).
    t = num * pl.reciprocal(vd, approx=True)

    # "not the empty self-surface" per element, exactly 0/1 (bf16 0/1 matmul).
    fullq = jnp.dot(full_ref[...], eexp_ref[...], preferred_element_type=jnp.float32)

    # viable mask (bf16 0/1) feeding the counts matmul: 6 VPU ops / element.
    ok = jnp.where((t > -0.0001) & (t < 1.0), fullq, 0.0).astype(jnp.bfloat16)

    # counts[n, j] += sum_i mask[n, i, j] for this q-chunk (bf16 x bf16 -> f32)
    counts_ref[...] += jnp.dot(ok, g_ref[...], preferred_element_type=jnp.float32)

    # Barycentric "flatten bug": the reference zeroes exactly one mask element
    # (point 0, scrambled surface 0, sample 0).  Subtract its contribution from
    # counts[0, 0] once, instead of a per-element kill path.
    @pl.when(jnp.logical_and(pl.program_id(0) == 0, k == 0))
    def _():
        t00 = t[0:1, 0:1]
        ok00 = jnp.where((t00 > -0.0001) & (t00 < 1.0),
                         full_ref[0:1, 0:1].astype(jnp.float32), 0.0)
        kill = pt_ref[0:1, 9:10]                      # bary-fail flag of point 0
        counts_ref[0:1, 0:1] = counts_ref[0:1, 0:1] - kill * ok00

    # finalize the shading on the last q-chunk
    @pl.when(k == pl.num_programs(1) - 1)
    def _():
        col = pt_ref[:, 4:7]
        opa = pt_ref[:, 7:8]
        cth = pt_ref[:, 8:9]
        hit = (counts_ref[...] > 0.0).astype(jnp.float32)     # (BP, Sp)
        shadow = jnp.sum(hit, axis=1, keepdims=True)          # (BP, 1)
        sun = float(s_samples) - shadow                       # exact (int counts)
        chosen = (jnp.clip(sun / 25.0, 0.0, 1.0)
                  + jnp.clip(shadow / 25.0, 0.0, 1.0))        # reference's 25.0
        allc = 0.8 * cth * chosen
        add = jnp.where(jnp.clip(opa, 0.0, 1.0) > 0.999, allc, 0.0)
        out_ref[...] = jnp.clip(col + add, 0.0, 1.0)


def _pick_tiles(npts, q_elems, ns):
    """Pick (BP, NPp, BQ, Qp): point block, padded points, q-chunk, padded Q."""
    # point block: multiple of 16 (bf16 sublane packing of the empty stream)
    npts16 = _round_up(max(npts, 1), 16)
    bp = min(256, npts16)
    # v7x has 2 TensorCores: keep >= 2 steps on the parallel axis if possible
    if _round_up(npts, bp) // bp < 2 and npts16 >= 32:
        bp = max(16, _round_up(npts16 // 2, 16))
    npp = _round_up(npts, bp)

    # q-chunk: multiple of 128; shrink until intermediates + table chunks fit
    # ~24 MiB (keeps the kernel inside v7x's 64 MiB VMEM at large scenes).
    qp0 = _round_up(q_elems, 128)
    bq = min(2048, qp0)

    def vmem_est(bq_):
        inter = 6 * bp * bq_ * 4                                # num,vd,t,fullq,ok
        tables = 2 * ((16 + 128) * bq_ * 4 + ns * bq_ * 2 + bq_ * 128 * 2)
        return inter + tables

    while bq > 128 and vmem_est(bq) > (24 << 20):
        bq //= 2
    qp = _round_up(q_elems, bq)
    return bp, npp, bq, qp


def fused_diffuse_shade(p, d, emp2, col, opa, costheta, bary_fail, vnT, kvec):
    NPo = p.shape[0]
    S = d.shape[1]
    NS = vnT.shape[1]
    Q = S * NS
    Sp = _round_up(S, 128)             # lane-padded sample axis for counts
    KD = _round_up(3 * S, 128)         # lane-padded K for the vd matmul
    BP, NPp, BQ, Qp = _pick_tiles(NPo, Q, NS)

    # ---- constant tables for the scrambled layout (point independent) -------
    q = jnp.arange(Q, dtype=jnp.int32)
    c_of_q = q % NS                    # original surface index
    r_of_q = q // NS                   # original sample index
    i_of_q = q // S                    # scrambled "surface" label
    j_of_q = q % S                     # scrambled "sample" label

    # numerator table (16, Qp): rows 0..3 = [k ; vn] per element, rest zero.
    numtab = jnp.zeros((16, Qp), jnp.float32)
    numtab = numtab.at[0, :Q].set(kvec[0, c_of_q])
    numtab = numtab.at[1:4, :Q].set(vnT[:, c_of_q])
    numtab = numtab.at[0, Q:].set(-1.0)   # padded lanes -> finite out-of-range t

    # direction-expansion * vn table (KD, Qp): row a*S + r.
    rows = jnp.arange(3 * S, dtype=jnp.int32)
    wd = jnp.zeros((KD, Qp), jnp.float32)
    wd = wd.at[:3 * S, :Q].set(
        (r_of_q[None, :] == (rows % S)[:, None]).astype(jnp.float32)
        * vnT[rows // S][:, c_of_q])

    # empty-surface expansion (NS, Qp) and sample-grouping (Qp, Sp), 0/1 bf16.
    eexp = jnp.zeros((NS, Qp), jnp.bfloat16)
    eexp = eexp.at[:, :Q].set(
        (i_of_q[None, :] == jnp.arange(NS)[:, None]).astype(jnp.bfloat16))
    g = jnp.zeros((Qp, Sp), jnp.bfloat16)
    g = g.at[:Q, :S].set(
        (j_of_q[:, None] == jnp.arange(S)[None, :]).astype(jnp.bfloat16))

    # ---- per-point streams, packed and padded ------------------------------
    # packed per-point data: [1 | -p(3) | col(3) | opa | costheta | bary_kill | pad]
    pt = jnp.zeros((NPp, 16), jnp.float32)
    pt = pt.at[:, 0].set(1.0)
    pt = pt.at[:NPo, 1:4].set(-p)
    pt = pt.at[:NPo, 4:7].set(col)
    pt = pt.at[:NPo, 7].set(opa)
    pt = pt.at[:NPo, 8].set(costheta)
    pt = pt.at[0, 9].set(bary_fail.astype(jnp.float32))

    # dstk[n, a*S + r] = d[n, r, a], lane-padded to KD columns (unmasked loads)
    dstk = jnp.transpose(d, (0, 2, 1)).reshape(NPo, 3 * S)
    dstk = jnp.pad(dstk, ((0, NPp - NPo), (0, KD - 3 * S)))

    # "full" (= not empty) rows, 0/1 bf16
    full2 = jnp.pad(1.0 - emp2, ((0, NPp - NPo), (0, 0))).astype(jnp.bfloat16)

    grid = (NPp // BP, Qp // BQ)

    out = pl.pallas_call(
        functools.partial(_fused_shade_kernel, s_samples=S),
        out_shape=jax.ShapeDtypeStruct((NPp, 3), jnp.float32),
        grid=grid,
        in_specs=[
            pl.BlockSpec((BP, 16), lambda i, k: (i, 0)),       # packed point data
            pl.BlockSpec((BP, KD), lambda i, k: (i, 0)),       # ray directions
            pl.BlockSpec((BP, NS), lambda i, k: (i, 0)),       # not-empty rows
            pl.BlockSpec((16, BQ), lambda i, k: (0, k)),       # [k ; vn] table
            pl.BlockSpec((KD, BQ), lambda i, k: (0, k)),       # d-expansion * vn
            pl.BlockSpec((NS, BQ), lambda i, k: (0, k)),       # empty-expansion
            pl.BlockSpec((BQ, Sp), lambda i, k: (k, 0)),       # sample grouping
        ],
        out_specs=pl.BlockSpec((BP, 3), lambda i, k: (i, 0)),
        scratch_shapes=[pltpu.VMEM((BP, Sp), jnp.float32)],    # counts accumulator
        compiler_params=pltpu.CompilerParams(
            dimension_semantics=("parallel", "arbitrary"),
            vmem_limit_bytes=48 * 1024 * 1024),                # <= v7x 64 MiB VMEM
    )(pt, dstk, full2, numtab, wd, eexp, g)
    return out[:NPo]


# ----------------------------------------------------------------------------
# Full forward (DiffuseShader.forward)
# ----------------------------------------------------------------------------
def diffuse_shader_forward(vecs, V, indices, pointindex, COL, OPA, p, l, normals, it):
    del it  # unused in compute, matches reference
    pointindex = jnp.squeeze(pointindex, 0).astype(jnp.int32)
    NP = pointindex.shape[0]
    local_pointindex = pointindex % NP

    lh = project_hemisphere_projection(vecs, p, l)          # (NP, S, 3)
    d = lh - p[:, None, :]                                  # (NP, S, 3), o == p

    # plane normals / offsets for every surface
    vn = jnp.cross(V[:, 1] - V[:, 0], V[:, 2] - V[:, 0], axis=-1)
    vn = vn / jnp.linalg.norm(vn, axis=1, keepdims=True)
    vnT = vn.T                                              # (3, NS)
    kvec = jnp.sum(vn * V[:, 3], axis=1)[None, :]           # (1, NS)
    NS = V.shape[0]

    # "empty" self-surface rows (scatter with possible duplicate rows, as ref)
    surf_idx = indices[pointindex, 0]
    emp2 = jnp.zeros((NP, NS), jnp.float32).at[local_pointindex, surf_idx].set(1.0)

    # barycentric scalar check: the reference's flatten bug reduces it to one
    # check using surface 0 and ray (point 0, sample 0) -> tiny scalar glue.
    t00 = (kvec[0, 0] - jnp.dot(vnT[:, 0], p[0])) / jnp.dot(vnT[:, 0], d[0, 0])
    r000 = p[0] + t00 * d[0, 0]
    a = V[0, 0]; b = V[0, 1]; c = V[0, 2]
    A_ = a[0] * r000[2] - a[2] * r000[0]
    B_ = a[0] * b[2] - a[2] * b[0]
    C_ = a[0] * r000[1] - a[1] * r000[0]
    D_ = a[0] * b[1] - a[1] * b[0]
    E_ = a[0] * c[2] - a[2] * c[0]
    F_ = (a[0] * b[2] - a[2] * b[0]) * (a[1] * c[0] - a[0] * c[1])
    G_ = a[0] * b[1] - a[1] * b[0]
    gam = G_ * (A_ * D_ - B_ * C_) / (D_ * (E_ * G_ + F_))
    beta = (C_ + (gam * a[1] * c[0] - gam * a[0] * c[1])) / D_
    alpha = (r000[0] - (beta * b[0] + gam * c[0])) / a[0]
    bary_fail = jnp.logical_not((beta > 0.0) & (gam > 0.0) & (alpha > 0.0))

    # colour / opacity / normal gathers (data-dependent -> plain JAX glue)
    col = COL[surf_idx, indices[pointindex, 1]].astype(jnp.float32)       # (NP, 3)
    opa = OPA[surf_idx, indices[pointindex, 1]].astype(jnp.float32)       # (NP,)
    n = normals[surf_idx]
    reflected = l[None, :] - p
    # TODO(synk): normalise_normals is not defined in the source file; assumed row-wise L2 normalisation.
    p_norm = reflected / jnp.linalg.norm(reflected, axis=1, keepdims=True)
    costheta = (jnp.sum(n * p_norm, axis=1)
                / (jnp.linalg.norm(n, axis=1) * jnp.linalg.norm(p_norm, axis=1)))

    return fused_diffuse_shade(p, d, emp2, col, opa, costheta, bary_fail, vnT, kvec)


# ----------------------------------------------------------------------------
if __name__ == "__main__":
    key = jax.random.PRNGKey(0)
    NP, NS, NI, C2 = 8, 16, 16, 4
    ks = jax.random.split(key, 8)

    V = jax.random.uniform(ks[0], (NS, 4, 3), jnp.float32, -2.0, 2.0)
    indices = jnp.stack([
        jax.random.randint(ks[1], (NI,), 0, NS),
        jax.random.randint(ks[2], (NI,), 0, C2),
    ], axis=1)
    pointindex = jax.random.randint(ks[3], (1, NP), 0, NI)
    COL = jax.random.uniform(ks[4], (NS, C2, 3), jnp.float32, 0.0, 1.0)
    OPA = jax.random.uniform(ks[5], (NS, C2), jnp.float32, 0.0, 2.0)
    p = jax.random.uniform(ks[6], (NP, 3), jnp.float32, -1.0, 1.0)
    l = jnp.asarray([3.0, 5.0, 2.0], jnp.float32)
    normals = jax.random.normal(ks[7], (NS, 3), jnp.float32)

    vecs = generate_hemisphere(1.0, (5j, 5j))               # (25, 3) module param

    render = diffuse_shader_forward(vecs, V, indices, pointindex, COL, OPA,
                                    p, l, normals, 0)
    render = jax.block_until_ready(render)
    assert render.shape == (NP, 3) and render.dtype == jnp.float32
    assert bool(jnp.all(jnp.isfinite(render)))
    print("KERNEL_OK")
</pallas_src>

<mosaic_0001>
module attributes {stable_mosaic.version = 11 : i64} {
  func.func @_fused_shade_kernel(%arg0: i32, %arg1: i32, %arg2: memref<16x16xf32, #tpu.memory_space<vmem>>, %arg3: memref<16x128xf32, #tpu.memory_space<vmem>>, %arg4: memref<16x16xbf16, #tpu.memory_space<vmem>>, %arg5: memref<16x512xf32, #tpu.memory_space<vmem>>, %arg6: memref<128x512xf32, #tpu.memory_space<vmem>>, %arg7: memref<16x512xbf16, #tpu.memory_space<vmem>>, %arg8: memref<512x128xbf16, #tpu.memory_space<vmem>>, %arg9: memref<16x3xf32, #tpu.memory_space<vmem>>, %arg10: memref<16x128xf32, #tpu.memory_space<vmem>>) attributes {dimension_semantics = [#tpu.dimension_semantics<parallel>, #tpu.dimension_semantics<arbitrary>], iteration_bounds = array<i64: 1, 1>, scalar_prefetch = 0 : i64, scratch_operands = 1 : i64, tpu.core_type = #tpu.core_type<tc>, window_params = [{transform_indices = @transform_0, window_bounds = array<i64: 16, 16>}, {transform_indices = @transform_1, window_bounds = array<i64: 16, 128>}, {transform_indices = @transform_2, window_bounds = array<i64: 16, 16>}, {transform_indices = @transform_3, window_bounds = array<i64: 16, 512>}, {transform_indices = @transform_4, window_bounds = array<i64: 128, 512>}, {transform_indices = @transform_5, window_bounds = array<i64: 16, 512>}, {transform_indices = @transform_6, window_bounds = array<i64: 512, 128>}, {transform_indices = @transform_7, window_bounds = array<i64: 16, 3>}]} {
    %c0_i32 = arith.constant 0 : i32
    %0 = arith.cmpi eq, %arg1, %c0_i32 : i32
    %1 = arith.extui %0 : i1 to i32
    %c0_i32_0 = arith.constant 0 : i32
    %2 = arith.cmpi ne, %1, %c0_i32_0 : i32
    scf.if %2 {
      %cst_29 = arith.constant 0.000000e+00 : f32
      %35 = vector.broadcast %cst_29 : f32 to vector<16x128xf32>
      %c0_30 = arith.constant 0 : index
      %c0_31 = arith.constant 0 : index
      %36 = vector.load %arg10[%c0_30, %c0_31] : memref<16x128xf32, #tpu.memory_space<vmem>>, vector<16x128xf32>
      tpu.vector_store %arg10[%c0_30, %c0_31], %35 {strides = array<i32>} : memref<16x128xf32, #tpu.memory_space<vmem>>, vector<16x128xf32>,
    } else {
    }
    %c0 = arith.constant 0 : index
    %c0_1 = arith.constant 0 : index
    %3 = vector.load %arg2[%c0, %c0_1] : memref<16x16xf32, #tpu.memory_space<vmem>>, vector<16x16xf32>
    %c0_2 = arith.constant 0 : index
    %c0_3 = arith.constant 0 : index
    %4 = vector.load %arg5[%c0_2, %c0_3] : memref<16x512xf32, #tpu.memory_space<vmem>>, vector<16x512xf32>
    %cst = arith.constant dense<0.000000e+00> : vector<16x512xf32>
    %5 = tpu.matmul %3, %4, %cst {dimension_numbers = #tpu.dot_dimension_numbers<[1], [0], [0], [1], [0, 0, 1, 1], [], []>} : vector<16x16xf32>, vector<16x512xf32>, vector<16x512xf32> -> vector<16x512xf32>
    %c0_4 = arith.constant 0 : index
    %c0_5 = arith.constant 0 : index
    %6 = vector.load %arg3[%c0_4, %c0_5] : memref<16x128xf32, #tpu.memory_space<vmem>>, vector<16x128xf32>
    %c0_6 = arith.constant 0 : index
    %c0_7 = arith.constant 0 : index
    %7 = vector.load %arg6[%c0_6, %c0_7] : memref<128x512xf32, #tpu.memory_space<vmem>>, vector<128x512xf32>
    %cst_8 = arith.constant dense<0.000000e+00> : vector<16x512xf32>
    %8 = tpu.matmul %6, %7, %cst_8 {dimension_numbers = #tpu.dot_dimension_numbers<[1], [0], [0], [1], [0, 0, 1, 1], [], []>} : vector<16x128xf32>, vector<128x512xf32>, vector<16x512xf32> -> vector<16x512xf32>
    %9 = tpu.reciprocal %8 {approx = true} : vector<16x512xf32> -> vector<16x512xf32>
    %10 = arith.mulf %5, %9 : vector<16x512xf32>
    %c0_9 = arith.constant 0 : index
    %c0_10 = arith.constant 0 : index
    %11 = vector.load %arg4[%c0_9, %c0_10] : memref<16x16xbf16, #tpu.memory_space<vmem>>, vector<16x16xbf16>
    %c0_11 = arith.constant 0 : index
    %c0_12 = arith.constant 0 : index
    %12 = vector.load %arg7[%c0_11, %c0_12] : memref<16x512xbf16, #tpu.memory_space<vmem>>, vector<16x512xbf16>
    %cst_13 = arith.constant dense<0.000000e+00> : vector<16x512xf32>
    %13 = tpu.matmul %11, %12, %cst_13 {dimension_numbers = #tpu.dot_dimension_numbers<[1], [0], [0], [1], [0, 0, 1, 1], [], []>} : vector<16x16xbf16>, vector<16x512xbf16>, vector<16x512xf32> -> vector<16x512xf32>
    %cst_14 = arith.constant -9.99999974E-5 : f32
    %14 = vector.broadcast %cst_14 : f32 to vector<16x512xf32>
    %15 = arith.cmpf ogt, %10, %14 : vector<16x512xf32>
    %cst_15 = arith.constant 1.000000e+00 : f32
    %16 = vector.broadcast %cst_15 : f32 to vector<16x512xf32>
    %17 = arith.cmpf olt, %10, %16 : vector<16x512xf32>
    %18 = arith.andi %15, %17 : vector<16x512xi1>
    %cst_16 = arith.constant 0.000000e+00 : f32
    %19 = vector.broadcast %cst_16 : f32 to vector<16x512xf32>
    %20 = arith.select %18, %13, %19 : vector<16x512xi1>, vector<16x512xf32>
    %21 = arith.truncf %20 : vector<16x512xf32> to vector<16x512xbf16>
    %c0_17 = arith.constant 0 : index
    %c0_18 = arith.constant 0 : index
    %22 = vector.load %arg10[%c0_17, %c0_18] : memref<16x128xf32, #tpu.memory_space<vmem>>, vector<16x128xf32>
    %c0_19 = arith.constant 0 : index
    %c0_20 = arith.constant 0 : index
    %23 = vector.load %arg8[%c0_19, %c0_20] : memref<512x128xbf16, #tpu.memory_space<vmem>>, vector<512x128xbf16>
    %cst_21 = arith.constant dense<0.000000e+00> : vector<16x128xf32>
    %24 = tpu.matmul %21, %23, %cst_21 {dimension_numbers = #tpu.dot_dimension_numbers<[1], [0], [0], [1], [0, 0, 1, 1], [], []>} : vector<16x512xbf16>, vector<512x128xbf16>, vector<16x128xf32> -> vector<16x128xf32>
    %25 = arith.addf %22, %24 : vector<16x128xf32>
    %c0_22 = arith.constant 0 : index
    %c0_23 = arith.constant 0 : index
    %26 = vector.load %arg10[%c0_22, %c0_23] : memref<16x128xf32, #tpu.memory_space<vmem>>, vector<16x128xf32>
    tpu.vector_store %arg10[%c0_22, %c0_23], %25 {strides = array<i32>} : memref<16x128xf32, #tpu.memory_space<vmem>>, vector<16x128xf32>,
    %c0_i32_24 = arith.constant 0 : i32
    %27 = arith.cmpi eq, %arg0, %c0_i32_24 : i32
    %c0_i32_25 = arith.constant 0 : i32
    %28 = arith.cmpi eq, %arg1, %c0_i32_25 : i32
    %29 = arith.andi %27, %28 : i1
    %30 = arith.extui %29 : i1 to i32
    %c0_i32_26 = arith.constant 0 : i32
    %31 = arith.cmpi ne, %30, %c0_i32_26 : i32
    scf.if %31 {
      %35 = vector.extract_strided_slice %10 {offsets = [0, 0], sizes = [1, 1], strides = [1, 1]} : vector<16x512xf32> to vector<1x1xf32>
      %cst_29 = arith.constant -9.99999974E-5 : f32
      %36 = vector.broadcast %cst_29 : f32 to vector<1x1xf32>
      %37 = arith.cmpf ogt, %35, %36 : vector<1x1xf32>
      %cst_30 = arith.constant 1.000000e+00 : f32
      %38 = vector.broadcast %cst_30 : f32 to vector<1x1xf32>
      %39 = arith.cmpf olt, %35, %38 : vector<1x1xf32>
      %40 = arith.andi %37, %39 : vector<1x1xi1>
      %c0_31 = arith.constant 0 : index
      %c0_32 = arith.constant 0 : index
      %41 = vector.load %arg4[%c0_31, %c0_32] : memref<16x16xbf16, #tpu.memory_space<vmem>>, vector<1x1xbf16>
      %42 = arith.extf %41 : vector<1x1xbf16> to vector<1x1xf32>
      %cst_33 = arith.constant 0.000000e+00 : f32
      %43 = vector.broadcast %cst_33 : f32 to vector<1x1xf32>
      %44 = arith.select %40, %42, %43 : vector<1x1xi1>, vector<1x1xf32>
      %c0_34 = arith.constant 0 : index
      %c9 = arith.constant 9 : index
      %45 = vector.load %arg2[%c0_34, %c9] : memref<16x16xf32, #tpu.memory_space<vmem>>, vector<1x1xf32>
      %c0_35 = arith.constant 0 : index
      %c0_36 = arith.constant 0 : index
      %46 = vector.load %arg10[%c0_35, %c0_36] : memref<16x128xf32, #tpu.memory_space<vmem>>, vector<1x1xf32>
      %47 = arith.mulf %45, %44 : vector<1x1xf32>
      %48 = arith.subf %46, %47 : vector<1x1xf32>
      %c0_37 = arith.constant 0 : index
      %c0_38 = arith.constant 0 : index
      %49 = vector.load %arg10[%c0_37, %c0_38] : memref<16x128xf32, #tpu.memory_space<vmem>>, vector<1x1xf32>
      tpu.vector_store %arg10[%c0_37, %c0_38], %48 {strides = array<i32>} : memref<16x128xf32, #tpu.memory_space<vmem>>, vector<1x1xf32>,
    } else {
    }
    %c0_i32_27 = arith.constant 0 : i32
    %32 = arith.cmpi eq, %arg1, %c0_i32_27 : i32
    %33 = arith.extui %32 : i1 to i32
    %c0_i32_28 = arith.constant 0 : i32
    %34 = arith.cmpi ne, %33, %c0_i32_28 : i32
    scf.if %34 {
      %c0_29 = arith.constant 0 : index
      %c4 = arith.constant 4 : index
      %35 = vector.load %arg2[%c0_29, %c4] : memref<16x16xf32, #tpu.memory_space<vmem>>, vector<16x3xf32>
      %c0_30 = arith.constant 0 : index
      %c7 = arith.constant 7 : index
      %36 = vector.load %arg2[%c0_30, %c7] : memref<16x16xf32, #tpu.memory_space<vmem>>, vector<16x1xf32>
      %c0_31 = arith.constant 0 : index
      %c8 = arith.constant 8 : index
      %37 = vector.load %arg2[%c0_31, %c8] : memref<16x16xf32, #tpu.memory_space<vmem>>, vector<16x1xf32>
      %c0_32 = arith.constant 0 : index
      %c0_33 = arith.constant 0 : index
      %38 = vector.load %arg10[%c0_32, %c0_33] : memref<16x128xf32, #tpu.memory_space<vmem>>, vector<16x128xf32>
      %cst_34 = arith.constant 0.000000e+00 : f32
      %39 = vector.broadcast %cst_34 : f32 to vector<16x128xf32>
      %40 = arith.cmpf ogt, %38, %39 : vector<16x128xf32>
      %41 = arith.extui %40 : vector<16x128xi1> to vector<16x128xi32>
      %42 = arith.sitofp %41 : vector<16x128xi32> to vector<16x128xf32>
      %cst_35 = arith.constant dense<0.000000e+00> : vector<16xf32>
      %43 = vector.multi_reduction <add>, %42, %cst_35 [1] : vector<16x128xf32> to vector<16xf32>
      %44 = vector.shape_cast %43 : vector<16xf32> to vector<16x1xf32>
      %cst_36 = arith.constant 2.500000e+01 : f32
      %45 = vector.broadcast %cst_36 : f32 to vector<16x1xf32>
      %46 = arith.subf %45, %44 : vector<16x1xf32>
      %cst_37 = arith.constant 2.500000e+01 : f32
      %47 = vector.broadcast %cst_37 : f32 to vector<16x1xf32>
      %48 = arith.divf %46, %47 : vector<16x1xf32>
      %cst_38 = arith.constant 0.000000e+00 : f32
      %cst_39 = arith.constant 1.000000e+00 : f32
      %49 = vector.broadcast %cst_38 : f32 to vector<16x1xf32>
      %50 = arith.maximumf %49, %48 : vector<16x1xf32>
      %51 = vector.broadcast %cst_39 : f32 to vector<16x1xf32>
      %52 = arith.minimumf %51, %50 : vector<16x1xf32>
      %cst_40 = arith.constant 2.500000e+01 : f32
      %53 = vector.broadcast %cst_40 : f32 to vector<16x1xf32>
      %54 = arith.divf %44, %53 : vector<16x1xf32>
      %cst_41 = arith.constant 0.000000e+00 : f32
      %cst_42 = arith.constant 1.000000e+00 : f32
      %55 = vector.broadcast %cst_41 : f32 to vector<16x1xf32>
      %56 = arith.maximumf %55, %54 : vector<16x1xf32>
      %57 = vector.broadcast %cst_42 : f32 to vector<16x1xf32>
      %58 = arith.minimumf %57, %56 : vector<16x1xf32>
      %59 = arith.addf %52, %58 : vector<16x1xf32>
      %cst_43 = arith.constant 8.000000e-01 : f32
      %60 = vector.broadcast %cst_43 : f32 to vector<16x1xf32>
      %61 = arith.mulf %60, %37 : vector<16x1xf32>
      %62 = arith.mulf %61, %59 : vector<16x1xf32>
      %cst_44 = arith.constant 0.000000e+00 : f32
      %cst_45 = arith.constant 1.000000e+00 : f32
      %63 = vector.broadcast %cst_44 : f32 to vector<16x1xf32>
      %64 = arith.maximumf %63, %36 : vector<16x1xf32>
      %65 = vector.broadcast %cst_45 : f32 to vector<16x1xf32>
      %66 = arith.minimumf %65, %64 : vector<16x1xf32>
      %cst_46 = arith.constant 9.990000e-01 : f32
      %67 = vector.broadcast %cst_46 : f32 to vector<16x1xf32>
      %68 = arith.cmpf ogt, %66, %67 : vector<16x1xf32>
      %cst_47 = arith.constant 0.000000e+00 : f32
      %69 = vector.broadcast %cst_47 : f32 to vector<16x1xf32>
      %70 = arith.select %68, %62, %69 : vector<16x1xi1>, vector<16x1xf32>
      %71 = vector.broadcast %70 : vector<16x1xf32> to vector<16x3xf32>
      %72 = arith.addf %35, %71 : vector<16x3xf32>
      %cst_48 = arith.constant 0.000000e+00 : f32
      %cst_49 = arith.constant 1.000000e+00 : f32
      %73 = vector.broadcast %cst_48 : f32 to vector<16x3xf32>
      %74 = arith.maximumf %73, %72 : vector<16x3xf32>
      %75 = vector.broadcast %cst_49 : f32 to vector<16x3xf32>
      %76 = arith.minimumf %75, %74 : vector<16x3xf32>
      %c0_50 = arith.constant 0 : index
      %c0_51 = arith.constant 0 : index
      %77 = vector.load %arg9[%c0_50, %c0_51] : memref<16x3xf32, #tpu.memory_space<vmem>>, vector<16x3xf32>
      tpu.vector_store %arg9[%c0_50, %c0_51], %76 {strides = array<i32>} : memref<16x3xf32, #tpu.memory_space<vmem>>, vector<16x3xf32>,
    } else {
    }
    return
  }
  func.func @transform_0(%arg0: i32, %arg1: i32) -> (i32, i32) {
    %c0_i32 = arith.constant 0 : i32
    %c0_i32_0 = arith.constant 0 : i32
    return %arg0, %c0_i32 : i32, i32
  }
  func.func @transform_1(%arg0: i32, %arg1: i32) -> (i32, i32) {
    %c0_i32 = arith.constant 0 : i32
    %c0_i32_0 = arith.constant 0 : i32
    return %arg0, %c0_i32 : i32, i32
  }
  func.func @transform_2(%arg0: i32, %arg1: i32) -> (i32, i32) {
    %c0_i32 = arith.constant 0 : i32
    %c0_i32_0 = arith.constant 0 : i32
    return %arg0, %c0_i32 : i32, i32
  }
  func.func @transform_3(%arg0: i32, %arg1: i32) -> (i32, i32) {
    %c0_i32 = arith.constant 0 : i32
    %c0_i32_0 = arith.constant 0 : i32
    return %c0_i32, %arg1 : i32, i32
  }
  func.func @transform_4(%arg0: i32, %arg1: i32) -> (i32, i32) {
    %c0_i32 = arith.constant 0 : i32
    %c0_i32_0 = arith.constant 0 : i32
    return %c0_i32, %arg1 : i32, i32
  }
  func.func @transform_5(%arg0: i32, %arg1: i32) -> (i32, i32) {
    %c0_i32 = arith.constant 0 : i32
    %c0_i32_0 = arith.constant 0 : i32
    return %c0_i32, %arg1 : i32, i32
  }
  func.func @transform_6(%arg0: i32, %arg1: i32) -> (i32, i32) {
    %c0_i32 = arith.constant 0 : i32
    %c0_i32_0 = arith.constant 0 : i32
    return %arg1, %c0_i32 : i32, i32
  }
  func.func @transform_7(%arg0: i32, %arg1: i32) -> (i32, i32) {
    %c0_i32 = arith.constant 0 : i32
    %c0_i32_0 = arith.constant 0 : i32
    return %arg0, %c0_i32 : i32, i32
  }
}

</mosaic_0001>

<llo_original>
// kernel: tpu_custom_call.1
$region0: #{tpu_custom_call.1}
  #allocation0 [shape = 'u32[]', space=smem, size = 0x4, offset = 0x4, fixed_abs, tag = 'smem constant byte address 0x4 - core index']
  #allocation1 [shape = 'u32[144,128]{1,0:T(1,128)}', space=vmem, size = 0x12000, scoped, tag = 'internal scratch']
  #allocation2 [shape = 'f32[16,128]{1,0:T(8,128)}', space=vmem, size = 0x2000, scoped, tag = 'scratch operand']
  %s0 = inlined_call_operand.hbm [shape: f32[16,16], index: 0, kind: input, shape index: {}]
  %s1 = inlined_call_operand.hbm [shape: f32[16,128], index: 1, kind: input, shape index: {}]
  %s2 = inlined_call_operand.hbm [shape: bf16[16,16], index: 2, kind: input, shape index: {}]
  %s3 = inlined_call_operand.hbm [shape: f32[16,512], index: 3, kind: input, shape index: {}]
  %s4 = inlined_call_operand.hbm [shape: f32[128,512], index: 4, kind: input, shape index: {}]
  %s5 = inlined_call_operand.hbm [shape: bf16[16,512], index: 5, kind: input, shape index: {}]
  %s6 = inlined_call_operand.hbm [shape: bf16[512,128], index: 6, kind: input, shape index: {}]
  %s7 = inlined_call_operand.vmem [shape: f32[16,3], index: 7, kind: output, shape index: {}]
  %s8 = sld [smem:[#allocation0]]
  $region78: #{tpu_custom_call.1} parent=0
    _
  %s10 = ssub.s32 1, %s8
  %s11 = scalar_select 0, %s10, %s8
  $region1: #{tpu_custom_call.1} parent=0
    #allocation3 [shape = 'u8[8192]{0}', space=vmem, size = 0x2000, scoped, tag = 'input window, operand 0, single buffered']
    #allocation4 [shape = 's32[1]{0}', space=sflag, size = 0x4, scoped, tag = 'scoped memory for tpu_custom_call.1']
    #allocation5 [shape = 'u8[8192]{0}', space=vmem, size = 0x2000, scoped, tag = 'input window, operand 1, single buffered']
    #allocation6 [shape = 's32[1]{0}', space=sflag, size = 0x4, scoped, tag = 'scoped memory for tpu_custom_call.1']
    #allocation7 [shape = 'u8[4096]{0}', space=vmem, size = 0x1000, scoped, tag = 'input window, operand 2, single buffered']
    #allocation8 [shape = 'u8[32768]{0}', space=vmem, size = 0x8000, scoped, tag = 'input window, operand 3, single buffered']
    #allocation9 [shape = 's32[1]{0}', space=sflag, size = 0x4, scoped, tag = 'scoped memory for tpu_custom_call.1']
    #allocation10 [shape = 'u8[262144]{0}', space=vmem, size = 0x40000, scoped, tag = 'input window, operand 4, single buffered']
    #allocation11 [shape = 'u8[16384]{0}', space=vmem, size = 0x4000, scoped, tag = 'input window, operand 5, single buffered']
    #allocation12 [shape = 's32[1]{0}', space=sflag, size = 0x4, scoped, tag = 'scoped memory for tpu_custom_call.1']
    #allocation13 [shape = 'u8[131072]{0}', space=vmem, size = 0x20000, scoped, tag = 'input window, operand 6, single buffered']
    %12 = vsyncpa [#allocation4], 0
    %13 = vsyncpa [#allocation6], 0
    %14 = vsyncpa [#allocation9], 0
    %15 = vsyncpa [#allocation12], 0
    // Predicated region
    $region2: #{tpu_custom_call.1} parent=1 // pred_check
      _
    $region3: #{tpu_custom_call.1} parent=1 // pred_check_branch
      %17 = sbr.rel (0) target = $region5
    $region4: #{tpu_custom_call.1} parent=1 // pred_region
      %s19 = ssub.s32 256, 256
      %20 = vsyncadd [#allocation4], %s19
      %s21 = sshll.u32 [#allocation3], 4
      %s22 = int_to_ptr.vmem [resolvable:$true] %s21
      %27 = dma.hbm_to_vmem [thread:$0]  %s0, 256, %s22, [#allocation4], 128, 128, 8
    $region5: #{tpu_custom_call.1} parent=1 // pred_fallthru
      _
    // Predicated region
    $region6: #{tpu_custom_call.1} parent=1 // pred_check
      _
    $region7: #{tpu_custom_call.1} parent=1 // pred_check_branch
      %29 = sbr.rel (0) target = $region9
    $region8: #{tpu_custom_call.1} parent=1 // pred_region
      %s31 = ssub.s32 256, 256
      %32 = vsyncadd [#allocation6], %s31
      %s33 = sshll.u32 [#allocation5], 4
      %s34 = int_to_ptr.vmem [resolvable:$true] %s33
      %39 = dma.hbm_to_vmem [thread:$0]  %s1, 256, %s34, [#allocation6], 128, 128, 8
    $region9: #{tpu_custom_call.1} parent=1 // pred_fallthru
      _
    // Predicated region
    $region10: #{tpu_custom_call.1} parent=1 // pred_check
      _
    $region11: #{tpu_custom_call.1} parent=1 // pred_check_branch
      %41 = sbr.rel (0) target = $region13
    $region12: #{tpu_custom_call.1} parent=1 // pred_region
      %s43 = ssub.s32 128, 128
      %44 = vsyncadd [#allocation6], %s43
      %s45 = sshll.u32 [#allocation7], 4
      %s46 = int_to_ptr.vmem [resolvable:$true] %s45
      %51 = dma.hbm_to_vmem [thread:$0]  %s2, 128, %s46, [#allocation6], 64, 64, 4
    $region13: #{tpu_custom_call.1} parent=1 // pred_fallthru
      _
    // Predicated region
    $region14: #{tpu_custom_call.1} parent=1 // pred_check
      _
    $region15: #{tpu_custom_call.1} parent=1 // pred_check_branch
      %53 = sbr.rel (0) target = $region17
    $region16: #{tpu_custom_call.1} parent=1 // pred_region
      %s55 = ssub.s32 1024, 1024
      %56 = vsyncadd [#allocation9], %s55
      %s57 = sshll.u32 [#allocation8], 4
      %s58 = int_to_ptr.vmem [resolvable:$true] %s57
      %63 = dma.hbm_to_vmem [thread:$0]  %s3, 1024, %s58, [#allocation9], 512, 512, 32
    $region17: #{tpu_custom_call.1} parent=1 // pred_fallthru
      _
    // Predicated region
    $region18: #{tpu_custom_call.1} parent=1 // pred_check
      _
    $region19: #{tpu_custom_call.1} parent=1 // pred_check_branch
      %65 = sbr.rel (0) target = $region21
    $region20: #{tpu_custom_call.1} parent=1 // pred_region
      %s67 = ssub.s32 8192, 8192
      %68 = vsyncadd [#allocation9], %s67
      %s69 = sshll.u32 [#allocation10], 4
      %s70 = int_to_ptr.vmem [resolvable:$true] %s69
      %75 = dma.hbm_to_vmem [thread:$0]  %s4, 8192, %s70, [#allocation9], 512, 512, 32
    $region21: #{tpu_custom_call.1} parent=1 // pred_fallthru
      _
    // Predicated region
    $region22: #{tpu_custom_call.1} parent=1 // pred_check
      _
    $region23: #{tpu_custom_call.1} parent=1 // pred_check_branch
      %77 = sbr.rel (0) target = $region25
    $region24: #{tpu_custom_call.1} parent=1 // pred_region
      %s79 = ssub.s32 512, 512
      %80 = vsyncadd [#allocation12], %s79
      %s81 = sshll.u32 [#allocation11], 4
      %s82 = int_to_ptr.vmem [resolvable:$true] %s81
      %87 = dma.hbm_to_vmem [thread:$0]  %s5, 512, %s82, [#allocation12], 256, 256, 16
    $region25: #{tpu_custom_call.1} parent=1 // pred_fallthru
      _
    // Predicated region
    $region26: #{tpu_custom_call.1} parent=1 // pred_check
      _
    $region27: #{tpu_custom_call.1} parent=1 // pred_check_branch
      %89 = sbr.rel (0) target = $region29
    $region28: #{tpu_custom_call.1} parent=1 // pred_region
      %s91 = ssub.s32 4096, 4096
      %92 = vsyncadd [#allocation12], %s91
      %s93 = sshll.u32 [#allocation13], 4
      %s94 = int_to_ptr.vmem [resolvable:$true] %s93
      %99 = dma.hbm_to_vmem [thread:$0]  %s6, 4096, %s94, [#allocation12], 64, 64, 4
    $region29: #{tpu_custom_call.1} parent=1 // pred_fallthru
      _
    // Predicated region
    $region30: #{tpu_custom_call.1} parent=1 // pred_check
      _
    $region31: #{tpu_custom_call.1} parent=1 // pred_check_branch
      %101 = sbr.rel (0) target = $region33
    $region32: #{tpu_custom_call.1} parent=1 // pred_region
      %102 = dma.done [#allocation4], 256
    $region33: #{tpu_custom_call.1} parent=1 // pred_fallthru
      _
    // Predicated region
    $region34: #{tpu_custom_call.1} parent=1 // pred_check
      _
    $region35: #{tpu_custom_call.1} parent=1 // pred_check_branch
      %104 = sbr.rel (0) target = $region37
    $region36: #{tpu_custom_call.1} parent=1 // pred_region
      %105 = dma.done [#allocation6], 256
    $region37: #{tpu_custom_call.1} parent=1 // pred_fallthru
      _
    // Predicated region
    $region38: #{tpu_custom_call.1} parent=1 // pred_check
      _
    $region39: #{tpu_custom_call.1} parent=1 // pred_check_branch
      %107 = sbr.rel (0) target = $region41
    $region40: #{tpu_custom_call.1} parent=1 // pred_region
      %108 = dma.done [#allocation6], 128
    $region41: #{tpu_custom_call.1} parent=1 // pred_fallthru
      _
    // Predicated region
    $region42: #{tpu_custom_call.1} parent=1 // pred_check
      _
    $region43: #{tpu_custom_call.1} parent=1 // pred_check_branch
      %110 = sbr.rel (0) target = $region45
    $region44: #{tpu_custom_call.1} parent=1 // pred_region
      %111 = dma.done [#allocation9], 1024
    $region45: #{tpu_custom_call.1} parent=1 // pred_fallthru
      _
    // Predicated region
    $region46: #{tpu_custom_call.1} parent=1 // pred_check
      _
    $region47: #{tpu_custom_call.1} parent=1 // pred_check_branch
      %113 = sbr.rel (0) target = $region49
    $region48: #{tpu_custom_call.1} parent=1 // pred_region
      %114 = dma.done [#allocation9], 8192
    $region49: #{tpu_custom_call.1} parent=1 // pred_fallthru
      _
    // Predicated region
    $region50: #{tpu_custom_call.1} parent=1 // pred_check
      _
    $region51: #{tpu_custom_call.1} parent=1 // pred_check_branch
      %116 = sbr.rel (0) target = $region53
    $region52: #{tpu_custom_call.1} parent=1 // pred_region
      %117 = dma.done [#allocation12], 512
    $region53: #{tpu_custom_call.1} parent=1 // pred_fallthru
      _
    // Predicated region
    $region54: #{tpu_custom_call.1} parent=1 // pred_check
      _
    $region55: #{tpu_custom_call.1} parent=1 // pred_check_branch
      %119 = sbr.rel (0) target = $region57
    $region56: #{tpu_custom_call.1} parent=1 // pred_region
      %120 = dma.done [#allocation12], 4096
    $region57: #{tpu_custom_call.1} parent=1 // pred_fallthru
      _
    %p122 = scmp.eq.s32.totalorder 0, 0
    // Predicated region
    $region58: #{tpu_custom_call.1} parent=1 // pred_check
      %p123 = pneg %p122
    $region59: #{tpu_custom_call.1} parent=1 // pred_check_branch
      %125 = sbr.rel (%p123) target = $region61
    $region60: #{tpu_custom_call.1} parent=1 // pred_region
      %126 = vst [vmem:[#allocation2] sm:$0xff] 0.0
      %127 = vst [vmem:[#allocation2 + $0x8] sm:$0xff] 0.0
    $region61: #{tpu_custom_call.1} parent=1 // pred_fallthru
      _
    %v128 = vld [vmem:[#allocation3] sm:$0xff]
    %v129 = vld [vmem:[#allocation3 + $0x8] sm:$0xff]
    %v130 = vld [vmem:[#allocation8] sm:$0xff]
    %v131 = vld [vmem:[#allocation8 + $0x8] sm:$0xff]
    %v132 = vld [vmem:[#allocation8 + $0x10] sm:$0xff]
    %v133 = vld [vmem:[#allocation8 + $0x18] sm:$0xff]
    %v134 = vld [vmem:[#allocation8 + $0x20] sm:$0xff]
    %v135 = vld [vmem:[#allocation8 + $0x28] sm:$0xff]
    %v136 = vld [vmem:[#allocation8 + $0x30] sm:$0xff]
    %v137 = vld [vmem:[#allocation8 + $0x38] sm:$0xff]
    %vm138 = vcmask 130048
    %v140 = vsel %vm138, %v128, 0
    %v143 = vsel %vm138, %v129, 0
    %145 = vmatprep.subr.mxu0 %v131
    %146 = vmatpush1.msra.mxu0 %v130
    %147 = vmatprep.subr.mxu0 %v135
    %148 = vmatpush1.msra.mxu0 %v134
    %149 = vmatprep.subr.mxu0 0.0
    %150 = vmatpush1.msra.mxu0 0.0
    %151 = vmatprep.subr.mxu0 0.0
    %152 = vmatpush1.msra.mxu0 0.0
    %153 = vmatprep.subr.mxu0 0.0
    %154 = vmatpush1.msra.mxu0 0.0
    %155 = vmatprep.subr.mxu0 0.0
    %156 = vmatpush1.msra.mxu0 0.0
    %157 = vmatprep.subr.mxu0 0.0
    %158 = vmatpush1.msra.mxu0 0.0
    %159 = vmatprep.subr.mxu0 0.0
    %160 = vmatpush1.msra.mxu0 0.0
    %161 = vmatprep.subr.mxu0 0.0
    %162 = vmatpush1.msra.mxu0 0.0
    %163 = vmatprep.subr.mxu0 0.0
    %164 = vmatpush1.msra.mxu0 0.0
    %165 = vmatprep.subr.mxu0 0.0
    %166 = vmatpush1.msra.mxu0 0.0
    %167 = vmatprep.subr.mxu0 0.0
    %168 = vmatpush1.msra.mxu0 0.0
    %169 = vmatprep.subr.mxu0 0.0
    %170 = vmatpush1.msra.mxu0 0.0
    %171 = vmatprep.subr.mxu0 0.0
    %172 = vmatpush1.msra.mxu0 0.0
    %173 = vmatprep.subr.mxu0 0.0
    %174 = vmatpush1.msra.mxu0 0.0
    %175 = vmatprep.subr.mxu0 0.0
    %176 = vmatpush1.msra.mxu0 0.0
    %177 = vmatprep.subr.mxu0 0.0
    %178 = vmatpush1.msra.mxu0 0.0
    %179 = vmatprep.subr.mxu0 0.0
    %180 = vmatpush1.msra.mxu0 0.0
    %181 = vmatprep.subr.mxu0 0.0
    %182 = vmatpush1.msra.mxu0 0.0
    %183 = vmatprep.subr.mxu0 0.0
    %184 = vmatpush1.msra.mxu0 0.0
    %185 = vmatprep.subr.mxu0 0.0
    %186 = vmatpush1.msra.mxu0 0.0
    %187 = vmatprep.subr.mxu0 0.0
    %188 = vmatpush1.msra.mxu0 0.0
    %189 = vmatprep.subr.mxu0 0.0
    %190 = vmatpush1.msra.mxu0 0.0
    %191 = vmatprep.subr.mxu0 0.0
    %192 = vmatpush1.msra.mxu0 0.0
    %193 = vmatprep.subr.mxu0 0.0
    %194 = vmatpush1.msra.mxu0 0.0
    %195 = vmatprep.subr.mxu0 0.0
    %196 = vmatpush1.msra.mxu0 0.0
    %197 = vmatprep.subr.mxu0 0.0
    %198 = vmatpush1.msra.mxu0 0.0
    %199 = vmatprep.subr.mxu0 0.0
    %200 = vmatpush1.msra.mxu0 0.0
    %201 = vmatprep.subr.mxu0 0.0
    %202 = vmatpush1.msra.mxu0 0.0
    %203 = vmatprep.subr.mxu0 0.0
    %204 = vmatpush1.msra.mxu0 0.0
    %205 = vmatprep.subr.mxu0 0.0
    %206 = vmatpush1.msra.mxu0 0.0
    %207 = vmatprep.subr.mxu0 0.0
    %208 = vmatpush1.msra.mxu0 0.0
    %209 = vmatprep.mubr.f32.mxu0 0.0
    %210 = vmatmul.mubr.f32.gmra.mrb[0].mxu0 %v140
    %v211 = vpop.f32.mrb[0].mxu0
    %v212 = vadd.f32 0.0, %v211
    %v213 = vpop.f32.mrb[0].mxu0
    %v214 = vadd.f32 0.0, %v213
    %215 = vmatprep.mubr.f32.mxu0 0.0
    %216 = vmatmul.mubr.f32.gmra.mrb[0].mxu0 %v143
    %v217 = vpop.f32.mrb[0].mxu0
    %v218 = vadd.f32 0.0, %v217
    %v219 = vpop.f32.mrb[0].mxu0
    %v220 = vadd.f32 0.0, %v219
    %221 = vdwg.mxu0
    %222 = vmatprep.subr.mxu0 %v133
    %223 = vmatpush1.msra.mxu0 %v132
    %224 = vmatprep.subr.mxu0 %v137
    %225 = vmatpush1.msra.mxu0 %v136
    %226 = vmatprep.subr.mxu0 0.0
    %227 = vmatpush1.msra.mxu0 0.0
    %228 = vmatprep.subr.mxu0 0.0
    %229 = vmatpush1.msra.mxu0 0.0
    %230 = vmatprep.subr.mxu0 0.0
    %231 = vmatpush1.msra.mxu0 0.0
    %232 = vmatprep.subr.mxu0 0.0
    %233 = vmatpush1.msra.mxu0 0.0
    %234 = vmatprep.subr.mxu0 0.0
    %235 = vmatpush1.msra.mxu0 0.0
    %236 = vmatprep.subr.mxu0 0.0
    %237 = vmatpush1.msra.mxu0 0.0
    %238 = vmatprep.subr.mxu0 0.0
    %239 = vmatpush1.msra.mxu0 0.0
    %240 = vmatprep.subr.mxu0 0.0
    %241 = vmatpush1.msra.mxu0 0.0
    %242 = vmatprep.subr.mxu0 0.0
    %243 = vmatpush1.msra.mxu0 0.0
    %244 = vmatprep.subr.mxu0 0.0
    %245 = vmatpush1.msra.mxu0 0.0
    %246 = vmatprep.subr.mxu0 0.0
    %247 = vmatpush1.msra.mxu0 0.0
    %248 = vmatprep.subr.mxu0 0.0
    %249 = vmatpush1.msra.mxu0 0.0
    %250 = vmatprep.subr.mxu0 0.0
    %251 = vmatpush1.msra.mxu0 0.0
    %252 = vmatprep.subr.mxu0 0.0
    %253 = vmatpush1.msra.mxu0 0.0
    %254 = vmatprep.subr.mxu0 0.0
    %255 = vmatpush1.msra.mxu0 0.0
    %256 = vmatprep.subr.mxu0 0.0
    %257 = vmatpush1.msra.mxu0 0.0
    %258 = vmatprep.subr.mxu0 0.0
    %259 = vmatpush1.msra.mxu0 0.0
    %260 = vmatprep.subr.mxu0 0.0
    %261 = vmatpush1.msra.mxu0 0.0
    %262 = vmatprep.subr.mxu0 0.0
    %263 = vmatpush1.msra.mxu0 0.0
    %264 = vmatprep.subr.mxu0 0.0
    %265 = vmatpush1.msra.mxu0 0.0
    %266 = vmatprep.subr.mxu0 0.0
    %267 = vmatpush1.msra.mxu0 0.0
    %268 = vmatprep.subr.mxu0 0.0
    %269 = vmatpush1.msra.mxu0 0.0
    %270 = vmatprep.subr.mxu0 0.0
    %271 = vmatpush1.msra.mxu0 0.0
    %272 = vmatprep.subr.mxu0 0.0
    %273 = vmatpush1.msra.mxu0 0.0
    %274 = vmatprep.subr.mxu0 0.0
    %275 = vmatpush1.msra.mxu0 0.0
    %276 = vmatprep.subr.mxu0 0.0
    %277 = vmatpush1.msra.mxu0 0.0
    %278 = vmatprep.subr.mxu0 0.0
    %279 = vmatpush1.msra.mxu0 0.0
    %280 = vmatprep.subr.mxu0 0.0
    %281 = vmatpush1.msra.mxu0 0.0
    %282 = vmatprep.subr.mxu0 0.0
    %283 = vmatpush1.msra.mxu0 0.0
    %284 = vmatprep.subr.mxu0 0.0
    %285 = vmatpush1.msra.mxu0 0.0
    %286 = vmatprep.mubr.f32.mxu0 0.0
    %287 = vmatmul.mubr.f32.gmra.mrb[0].mxu0 %v140
    %v288 = vpop.f32.mrb[0].mxu0
    %v289 = vadd.f32 0.0, %v288
    %v290 = vpop.f32.mrb[0].mxu0
    %v291 = vadd.f32 0.0, %v290
    %292 = vmatprep.mubr.f32.mxu0 0.0
    %293 = vmatmul.mubr.f32.gmra.mrb[0].mxu0 %v143
    %v294 = vpop.f32.mrb[0].mxu0
    %v295 = vadd.f32 0.0, %v294
    %v296 = vpop.f32.mrb[0].mxu0
    %v297 = vadd.f32 0.0, %v296
    %298 = vdwg.mxu0
    %v299 = vld [vmem:[#allocation5] sm:$0xff]
    %v300 = vld [vmem:[#allocation5 + $0x8] sm:$0xff]
    %v301 = vld [vmem:[#allocation10] sm:$0xff]
    %v302 = vld [vmem:[#allocation10 + $0x8] sm:$0xff]
    %v303 = vld [vmem:[#allocation10 + $0x10] sm:$0xff]
    %v304 = vld [vmem:[#allocation10 + $0x18] sm:$0xff]
    %v305 = vld [vmem:[#allocation10 + $0x20] sm:$0xff]
    %v306 = vld [vmem:[#allocation10 + $0x28] sm:$0xff]
    %v307 = vld [vmem:[#allocation10 + $0x30] sm:$0xff]
    %v308 = vld [vmem:[#allocation10 + $0x38] sm:$0xff]
    %v309 = vld [vmem:[#allocation10 + $0x40] sm:$0xff]
    %v310 = vld [vmem:[#allocation10 + $0x48] sm:$0xff]
    %v311 = vld [vmem:[#allocation10 + $0x50] sm:$0xff]
    %v312 = vld [vmem:[#allocation10 + $0x58] sm:$0xff]
    %v313 = vld [vmem:[#allocation10 + $0x60] sm:$0xff]
    %v314 = vld [vmem:[#allocation10 + $0x68] sm:$0xff]
    %v315 = vld [vmem:[#allocation10 + $0x70] sm:$0xff]
    %v316 = vld [vmem:[#allocation10 + $0x78] sm:$0xff]
    %v317 = vld [vmem:[#allocation10 + $0x80] sm:$0xff]
    %v318 = vld [vmem:[#allocation10 + $0x88] sm:$0xff]
    %v319 = vld [vmem:[#allocation10 + $0x90] sm:$0xff]
    %v320 = vld [vmem:[#allocation10 + $0x98] sm:$0xff]
    %v321 = vld [vmem:[#allocation10 + $0xa0] sm:$0xff]
    %v322 = vld [vmem:[#allocation10 + $0xa8] sm:$0xff]
    %v323 = vld [vmem:[#allocation10 + $0xb0] sm:$0xff]
    %v324 = vld [vmem:[#allocation10 + $0xb8] sm:$0xff]
    %v325 = vld [vmem:[#allocation10 + $0xc0] sm:$0xff]
    %v326 = vld [vmem:[#allocation10 + $0xc8] sm:$0xff]
    %v327 = vld [vmem:[#allocation10 + $0xd0] sm:$0xff]
    %v328 = vld [vmem:[#allocation10 + $0xd8] sm:$0xff]
    %v329 = vld [vmem:[#allocation10 + $0xe0] sm:$0xff]
    %v330 = vld [vmem:[#allocation10 + $0xe8] sm:$0xff]
    %v331 = vld [vmem:[#allocation10 + $0xf0] sm:$0xff]
    %v332 = vld [vmem:[#allocation10 + $0xf8] sm:$0xff]
    %v333 = vld [vmem:[#allocation10 + $0x100] sm:$0xff]
    %v334 = vld [vmem:[#allocation10 + $0x108] sm:$0xff]
    %v335 = vld [vmem:[#allocation10 + $0x110] sm:$0xff]
    %v336 = vld [vmem:[#allocation10 + $0x118] sm:$0xff]
    %v337 = vld [vmem:[#allocation10 + $0x120] sm:$0xff]
    %v338 = vld [vmem:[#allocation10 + $0x128] sm:$0xff]
    %v339 = vld [vmem:[#allocation10 + $0x130] sm:$0xff]
    %v340 = vld [vmem:[#allocation10 + $0x138] sm:$0xff]
    %v341 = vld [vmem:[#allocation10 + $0x140] sm:$0xff]
    %v342 = vld [vmem:[#allocation10 + $0x148] sm:$0xff]
    %v343 = vld [vmem:[#allocation10 + $0x150] sm:$0xff]
    %v344 = vld [vmem:[#allocation10 + $0x158] sm:$0xff]
    %v345 = vld [vmem:[#allocation10 + $0x160] sm:$0xff]
    %v346 = vld [vmem:[#allocation10 + $0x168] sm:$0xff]
    %v347 = vld [vmem:[#allocation10 + $0x170] sm:$0xff]
    %v348 = vld [vmem:[#allocation10 + $0x178] sm:$0xff]
    %v349 = vld [vmem:[#allocation10 + $0x180] sm:$0xff]
    %v350 = vld [vmem:[#allocation10 + $0x188] sm:$0xff]
    %v351 = vld [vmem:[#allocation10 + $0x190] sm:$0xff]
    %v352 = vld [vmem:[#allocation10 + $0x198] sm:$0xff]
    %v353 = vld [vmem:[#allocation10 + $0x1a0] sm:$0xff]
    %v354 = vld [vmem:[#allocation10 + $0x1a8] sm:$0xff]
    %v355 = vld [vmem:[#allocation10 + $0x1b0] sm:$0xff]
    %v356 = vld [vmem:[#allocation10 + $0x1b8] sm:$0xff]
    %v357 = vld [vmem:[#allocation10 + $0x1c0] sm:$0xff]
    %v358 = vld [vmem:[#allocation10 + $0x1c8] sm:$0xff]
    %v359 = vld [vmem:[#allocation10 + $0x1d0] sm:$0xff]
    %v360 = vld [vmem:[#allocation10 + $0x1d8] sm:$0xff]
    %v361 = vld [vmem:[#allocation10 + $0x1e0] sm:$0xff]
    %v362 = vld [vmem:[#allocation10 + $0x1e8] sm:$0xff]
    %v363 = vld [vmem:[#allocation10 + $0x1f0] sm:$0xff]
    %v364 = vld [vmem:[#allocation10 + $0x1f8] sm:$0xff]
    %365 = vmatprep.subr.mxu0 %v302
    %366 = vmatpush1.msra.mxu0 %v301
    %367 = vmatprep.subr.mxu0 %v306
    %368 = vmatpush1.msra.mxu0 %v305
    %369 = vmatprep.subr.mxu0 %v310
    %370 = vmatpush1.msra.mxu0 %v309
    %371 = vmatprep.subr.mxu0 %v314
    %372 = vmatpush1.msra.mxu0 %v313
    %373 = vmatprep.subr.mxu0 %v318
    %374 = vmatpush1.msra.mxu0 %v317
    %375 = vmatprep.subr.mxu0 %v322
    %376 = vmatpush1.msra.mxu0 %v321
    %377 = vmatprep.subr.mxu0 %v326
    %378 = vmatpush1.msra.mxu0 %v325
    %379 = vmatprep.subr.mxu0 %v330
    %380 = vmatpush1.msra.mxu0 %v329
    %381 = vmatprep.subr.mxu0 %v334
    %382 = vmatpush1.msra.mxu0 %v333
    %383 = vmatprep.subr.mxu0 %v338
    %384 = vmatpush1.msra.mxu0 %v337
    %385 = vmatprep.subr.mxu0 %v342
    %386 = vmatpush1.msra.mxu0 %v341
    %387 = vmatprep.subr.mxu0 %v346
    %388 = vmatpush1.msra.mxu0 %v345
    %389 = vmatprep.subr.mxu0 %v350
    %390 = vmatpush1.msra.mxu0 %v349
    %391 = vmatprep.subr.mxu0 %v354
    %392 = vmatpush1.msra.mxu0 %v353
    %393 = vmatprep.subr.mxu0 %v358
    %394 = vmatpush1.msra.mxu0 %v357
    %395 = vmatprep.subr.mxu0 %v362
    %396 = vmatpush1.msra.mxu0 %v361
    %397 = vmatprep.subr.mxu0 0.0
    %398 = vmatpush1.msra.mxu0 0.0
    %399 = vmatprep.subr.mxu0 0.0
    %400 = vmatpush1.msra.mxu0 0.0
    %401 = vmatprep.subr.mxu0 0.0
    %402 = vmatpush1.msra.mxu0 0.0
    %403 = vmatprep.subr.mxu0 0.0
    %404 = vmatpush1.msra.mxu0 0.0
    %405 = vmatprep.subr.mxu0 0.0
    %406 = vmatpush1.msra.mxu0 0.0
    %407 = vmatprep.subr.mxu0 0.0
    %408 = vmatpush1.msra.mxu0 0.0
    %409 = vmatprep.subr.mxu0 0.0
    %410 = vmatpush1.msra.mxu0 0.0
    %411 = vmatprep.subr.mxu0 0.0
    %412 = vmatpush1.msra.mxu0 0.0
    %413 = vmatprep.subr.mxu0 0.0
    %414 = vmatpush1.msra.mxu0 0.0
    %415 = vmatprep.subr.mxu0 0.0
    %416 = vmatpush1.msra.mxu0 0.0
    %417 = vmatprep.subr.mxu0 0.0
    %418 = vmatpush1.msra.mxu0 0.0
    %419 = vmatprep.subr.mxu0 0.0
    %420 = vmatpush1.msra.mxu0 0.0
    %421 = vmatprep.subr.mxu0 0.0
    %422 = vmatpush1.msra.mxu0 0.0
    %423 = vmatprep.subr.mxu0 0.0
    %424 = vmatpush1.msra.mxu0 0.0
    %425 = vmatprep.subr.mxu0 0.0
    %426 = vmatpush1.msra.mxu0 0.0
    %427 = vmatprep.subr.mxu0 0.0
    %428 = vmatpush1.msra.mxu0 0.0
    %429 = vmatprep.mubr.f32.mxu0 0.0
    %430 = vmatmul.mubr.f32.gmra.mrb[0].mxu0 %v299
    %v431 = vpop.f32.mrb[0].mxu0
    %v432 = vadd.f32 0.0, %v431
    %v433 = vpop.f32.mrb[0].mxu0
    %v434 = vadd.f32 0.0, %v433
    %435 = vmatprep.mubr.f32.mxu0 0.0
    %436 = vmatmul.mubr.f32.gmra.mrb[0].mxu0 %v300
    %v437 = vpop.f32.mrb[0].mxu0
    %v438 = vadd.f32 0.0, %v437
    %v439 = vpop.f32.mrb[0].mxu0
    %v440 = vadd.f32 0.0, %v439
    %441 = vdwg.mxu0
    %442 = vmatprep.subr.mxu0 %v304
    %443 = vmatpush1.msra.mxu0 %v303
    %444 = vmatprep.subr.mxu0 %v308
    %445 = vmatpush1.msra.mxu0 %v307
    %446 = vmatprep.subr.mxu0 %v312
    %447 = vmatpush1.msra.mxu0 %v311
    %448 = vmatprep.subr.mxu0 %v316
    %449 = vmatpush1.msra.mxu0 %v315
    %450 = vmatprep.subr.mxu0 %v320
    %451 = vmatpush1.msra.mxu0 %v319
    %452 = vmatprep.subr.mxu0 %v324
    %453 = vmatpush1.msra.mxu0 %v323
    %454 = vmatprep.subr.mxu0 %v328
    %455 = vmatpush1.msra.mxu0 %v327
    %456 = vmatprep.subr.mxu0 %v332
    %457 = vmatpush1.msra.mxu0 %v331
    %458 = vmatprep.subr.mxu0 %v336
    %459 = vmatpush1.msra.mxu0 %v335
    %460 = vmatprep.subr.mxu0 %v340
    %461 = vmatpush1.msra.mxu0 %v339
    %462 = vmatprep.subr.mxu0 %v344
    %463 = vmatpush1.msra.mxu0 %v343
    %464 = vmatprep.subr.mxu0 %v348
    %465 = vmatpush1.msra.mxu0 %v347
    %466 = vmatprep.subr.mxu0 %v352
    %467 = vmatpush1.msra.mxu0 %v351
    %468 = vmatprep.subr.mxu0 %v356
    %469 = vmatpush1.msra.mxu0 %v355
    %470 = vmatprep.subr.mxu0 %v360
    %471 = vmatpush1.msra.mxu0 %v359
    %472 = vmatprep.subr.mxu0 %v364
    %473 = vmatpush1.msra.mxu0 %v363
    %474 = vmatprep.subr.mxu0 0.0
    %475 = vmatpush1.msra.mxu0 0.0
    %476 = vmatprep.subr.mxu0 0.0
    %477 = vmatpush1.msra.mxu0 0.0
    %478 = vmatprep.subr.mxu0 0.0
    %479 = vmatpush1.msra.mxu0 0.0
    %480 = vmatprep.subr.mxu0 0.0
    %481 = vmatpush1.msra.mxu0 0.0
    %482 = vmatprep.subr.mxu0 0.0
    %483 = vmatpush1.msra.mxu0 0.0
    %484 = vmatprep.subr.mxu0 0.0
    %485 = vmatpush1.msra.mxu0 0.0
    %486 = vmatprep.subr.mxu0 0.0
    %487 = vmatpush1.msra.mxu0 0.0
    %488 = vmatprep.subr.mxu0 0.0
    %489 = vmatpush1.msra.mxu0 0.0
    %490 = vmatprep.subr.mxu0 0.0
    %491 = vmatpush1.msra.mxu0 0.0
    %492 = vmatprep.subr.mxu0 0.0
    %493 = vmatpush1.msra.mxu0 0.0
    %494 = vmatprep.subr.mxu0 0.0
    %495 = vmatpush1.msra.mxu0 0.0
    %496 = vmatprep.subr.mxu0 0.0
    %497 = vmatpush1.msra.mxu0 0.0
    %498 = vmatprep.subr.mxu0 0.0
    %499 = vmatpush1.msra.mxu0 0.0
    %500 = vmatprep.subr.mxu0 0.0
    %501 = vmatpush1.msra.mxu0 0.0
    %502 = vmatprep.subr.mxu0 0.0
    %503 = vmatpush1.msra.mxu0 0.0
    %504 = vmatprep.subr.mxu0 0.0
    %505 = vmatpush1.msra.mxu0 0.0
    %506 = vmatprep.mubr.f32.mxu0 0.0
    %507 = vmatmul.mubr.f32.gmra.mrb[0].mxu0 %v299
    %v508 = vpop.f32.mrb[0].mxu0
    %v509 = vadd.f32 0.0, %v508
    %v510 = vpop.f32.mrb[0].mxu0
    %v511 = vadd.f32 0.0, %v510
    %512 = vmatprep.mubr.f32.mxu0 0.0
    %513 = vmatmul.mubr.f32.gmra.mrb[0].mxu0 %v300
    %v514 = vpop.f32.mrb[0].mxu0
    %v515 = vadd.f32 0.0, %v514
    %v516 = vpop.f32.mrb[0].mxu0
    %v517 = vadd.f32 0.0, %v516
    %518 = vdwg.mxu0
    %v519 = vrcp.pop %v432
    %v520 = vrcp.pop %v434
    %v521 = vrcp.pop %v509
    %v522 = vrcp.pop %v511
    %v523 = vrcp.pop %v438
    %v524 = vrcp.pop %v440
    %v525 = vrcp.pop %v515
    %v526 = vrcp.pop %v517
    %v527 = vmul.f32 %v212, %v519
    %v528 = vmul.f32 %v214, %v520
    %v529 = vmul.f32 %v289, %v521
    %v530 = vmul.f32 %v291, %v522
    %v531 = vmul.f32 %v218, %v523
    %v532 = vmul.f32 %v220, %v524
    %v533 = vmul.f32 %v295, %v525
    %v534 = vmul.f32 %v297, %v526
    %v535 = vld [vmem:[#allocation7] sm:$0xf]
    %v536 = vld [vmem:[#allocation7 + $0x4] sm:$0xf]
    %v537 = vld [vmem:[#allocation11] sm:$0xff]
    %v538 = vld [vmem:[#allocation11 + $0x8] sm:$0xff]
    %v539 = vld [vmem:[#allocation11 + $0x10] sm:$0xff]
    %v540 = vld [vmem:[#allocation11 + $0x18] sm:$0xff]
    %v543 = vunpack.c.l.b16 %v535
    %v544 = vunpack.c.l.b16 %v536
    %v545 = vpack.c.b16 %v544, %v543
    %v550 = vunpack.c.l.b16 %v537
    %v551 = vunpack.c.h.b16 %v537
    %v552 = vunpack.c.l.b16 %v538
    %v553 = vunpack.c.h.b16 %v538
    %v554 = vunpack.c.l.b16 %v539
    %v555 = vunpack.c.h.b16 %v539
    %v556 = vunpack.c.l.b16 %v540
    %v557 = vunpack.c.h.b16 %v540
    %v558 = vpack.c.b16 %v554, %v550
    %v559 = vpack.c.b16 %v555, %v551
    %v560 = vpack.c.b16 %v556, %v552
    %v561 = vpack.c.b16 %v557, %v553
    %v567 = vsel %vm138, %v545, 0
    %569 = vmatprep.subr.bf16.mxu0 %v559
    %570 = vmatpush1.bf16.msra.mxu0 %v558
    %571 = vmatprep.subr.bf16.mxu0 0
    %572 = vmatpush1.bf16.msra.mxu0 0
    %573 = vmatprep.subr.bf16.mxu0 0
    %574 = vmatpush1.bf16.msra.mxu0 0
    %575 = vmatprep.subr.bf16.mxu0 0
    %576 = vmatpush1.bf16.msra.mxu0 0
    %577 = vmatprep.subr.bf16.mxu0 0
    %578 = vmatpush1.bf16.msra.mxu0 0
    %579 = vmatprep.subr.bf16.mxu0 0
    %580 = vmatpush1.bf16.msra.mxu0 0
    %581 = vmatprep.subr.bf16.mxu0 0
    %582 = vmatpush1.bf16.msra.mxu0 0
    %583 = vmatprep.subr.bf16.mxu0 0
    %584 = vmatpush1.bf16.msra.mxu0 0
    %585 = vmatprep.subr.bf16.mxu0 0
    %586 = vmatpush1.bf16.msra.mxu0 0
    %587 = vmatprep.subr.bf16.mxu0 0
    %588 = vmatpush1.bf16.msra.mxu0 0
    %589 = vmatprep.subr.bf16.mxu0 0
    %590 = vmatpush1.bf16.msra.mxu0 0
    %591 = vmatprep.subr.bf16.mxu0 0
    %592 = vmatpush1.bf16.msra.mxu0 0
    %593 = vmatprep.subr.bf16.mxu0 0
    %594 = vmatpush1.bf16.msra.mxu0 0
    %595 = vmatprep.subr.bf16.mxu0 0
    %596 = vmatpush1.bf16.msra.mxu0 0
    %597 = vmatprep.subr.bf16.mxu0 0
    %598 = vmatpush1.bf16.msra.mxu0 0
    %599 = vmatprep.subr.bf16.mxu0 0
    %600 = vmatpush1.bf16.msra.mxu0 0
    %601 = vmatprep.mubr.bf16.mxu0 0
    %602 = vmatmul.mubr.bf16.gmra.mrb[0].mxu0 %v567
    %v603 = vpop.f32.mrb[0].mxu0
    %v604 = vadd.f32 0.0, %v603
    %v605 = vpop.f32.mrb[0].mxu0
    %v606 = vadd.f32 0.0, %v605
    %v607 = vpop.f32.mrb[0].mxu0
    %v608 = vadd.f32 0.0, %v607
    %v609 = vpop.f32.mrb[0].mxu0
    %v610 = vadd.f32 0.0, %v609
    %611 = vdwg.mxu0
    %612 = vmatprep.subr.bf16.mxu0 %v561
    %613 = vmatpush1.bf16.msra.mxu0 %v560
    %614 = vmatprep.subr.bf16.mxu0 0
    %615 = vmatpush1.bf16.msra.mxu0 0
    %616 = vmatprep.subr.bf16.mxu0 0
    %617 = vmatpush1.bf16.msra.mxu0 0
    %618 = vmatprep.subr.bf16.mxu0 0
    %619 = vmatpush1.bf16.msra.mxu0 0
    %620 = vmatprep.subr.bf16.mxu0 0
    %621 = vmatpush1.bf16.msra.mxu0 0
    %622 = vmatprep.subr.bf16.mxu0 0
    %623 = vmatpush1.bf16.msra.mxu0 0
    %624 = vmatprep.subr.bf16.mxu0 0
    %625 = vmatpush1.bf16.msra.mxu0 0
    %626 = vmatprep.subr.bf16.mxu0 0
    %627 = vmatpush1.bf16.msra.mxu0 0
    %628 = vmatprep.subr.bf16.mxu0 0
    %629 = vmatpush1.bf16.msra.mxu0 0
    %630 = vmatprep.subr.bf16.mxu0 0
    %631 = vmatpush1.bf16.msra.mxu0 0
    %632 = vmatprep.subr.bf16.mxu0 0
    %633 = vmatpush1.bf16.msra.mxu0 0
    %634 = vmatprep.subr.bf16.mxu0 0
    %635 = vmatpush1.bf16.msra.mxu0 0
    %636 = vmatprep.subr.bf16.mxu0 0
    %637 = vmatpush1.bf16.msra.mxu0 0
    %638 = vmatprep.subr.bf16.mxu0 0
    %639 = vmatpush1.bf16.msra.mxu0 0
    %640 = vmatprep.subr.bf16.mxu0 0
    %641 = vmatpush1.bf16.msra.mxu0 0
    %642 = vmatprep.subr.bf16.mxu0 0
    %643 = vmatpush1.bf16.msra.mxu0 0
    %644 = vmatprep.mubr.bf16.mxu0 0
    %645 = vmatmul.mubr.bf16.gmra.mrb[0].mxu0 %v567
    %v646 = vpop.f32.mrb[0].mxu0
    %v647 = vadd.f32 0.0, %v646
    %v648 = vpop.f32.mrb[0].mxu0
    %v649 = vadd.f32 0.0, %v648
    %v650 = vpop.f32.mrb[0].mxu0
    %v651 = vadd.f32 0.0, %v650
    %v652 = vpop.f32.mrb[0].mxu0
    %v653 = vadd.f32 0.0, %v652
    %654 = vdwg.mxu0
    %vm655 = vcmp.gt.f32.partialorder %v527, -0.0001
    %vm656 = vcmp.gt.f32.partialorder %v528, -0.0001
    %vm657 = vcmp.gt.f32.partialorder %v529, -0.0001
    %vm658 = vcmp.gt.f32.partialorder %v530, -0.0001
    %vm659 = vcmp.gt.f32.partialorder %v531, -0.0001
    %vm660 = vcmp.gt.f32.partialorder %v532, -0.0001
    %vm661 = vcmp.gt.f32.partialorder %v533, -0.0001
    %vm662 = vcmp.gt.f32.partialorder %v534, -0.0001
    %vm663 = vcmp.lt.f32.partialorder %v527, 1.0
    %vm664 = vcmp.lt.f32.partialorder %v528, 1.0
    %vm665 = vcmp.lt.f32.partialorder %v529, 1.0
    %vm666 = vcmp.lt.f32.partialorder %v530, 1.0
    %vm667 = vcmp.lt.f32.partialorder %v531, 1.0
    %vm668 = vcmp.lt.f32.partialorder %v532, 1.0
    %vm669 = vcmp.lt.f32.partialorder %v533, 1.0
    %vm670 = vcmp.lt.f32.partialorder %v534, 1.0
    %vm671 = vmand %vm655, %vm663
    %vm672 = vmand %vm656, %vm664
    %vm673 = vmand %vm657, %vm665
    %vm674 = vmand %vm658, %vm666
    %vm675 = vmand %vm659, %vm667
    %vm676 = vmand %vm660, %vm668
    %vm677 = vmand %vm661, %vm669
    %vm678 = vmand %vm662, %vm670
    %v679 = vsel %vm671, %v604, 0.0
    %v680 = vsel %vm672, %v606, 0.0
    %v681 = vsel %vm673, %v647, 0.0
    %v682 = vsel %vm674, %v649, 0.0
    %v683 = vsel %vm675, %v608, 0.0
    %v684 = vsel %vm676, %v610, 0.0
    %v685 = vsel %vm677, %v651, 0.0
    %v686 = vsel %vm678, %v653, 0.0
    %v687 = vpack.c.bf16 %v683, %v679
    %v688 = vpack.c.bf16 %v684, %v680
    %v689 = vpack.c.bf16 %v685, %v681
    %v690 = vpack.c.bf16 %v686, %v682
    %v691 = vld [vmem:[#allocation2] sm:$0xff]
    %v692 = vld [vmem:[#allocation2 + $0x8] sm:$0xff]
    %v693 = vld [vmem:[#allocation13] sm:$0xf]
    %v694 = vld [vmem:[#allocation13 + $0x4] sm:$0xf]
    %v695 = vld [vmem:[#allocation13 + $0x8] sm:$0xf]
    %v696 = vld [vmem:[#allocation13 + $0xc] sm:$0xf]
    %v697 = vld [vmem:[#allocation13 + $0x10] sm:$0xf]
    %v698 = vld [vmem:[#allocation13 + $0x14] sm:$0xf]
    %v699 = vld [vmem:[#allocation13 + $0x18] sm:$0xf]
    %v700 = vld [vmem:[#allocation13 + $0x1c] sm:$0xf]
    %v701 = vld [vmem:[#allocation13 + $0x20] sm:$0xf]
    %v702 = vld [vmem:[#allocation13 + $0x24] sm:$0xf]
    %v703 = vld [vmem:[#allocation13 + $0x28] sm:$0xf]
    %v704 = vld [vmem:[#allocation13 + $0x2c] sm:$0xf]
    %v705 = vld [vmem:[#allocation13 + $0x30] sm:$0xf]
    %v706 = vld [vmem:[#allocation13 + $0x34] sm:$0xf]
    %v707 = vld [vmem:[#allocation13 + $0x38] sm:$0xf]
    %v708 = vld [vmem:[#allocation13 + $0x3c] sm:$0xf]
    %v709 = vld [vmem:[#allocation13 + $0x40] sm:$0xf]
    %v710 = vld [vmem:[#allocation13 + $0x44] sm:$0xf]
    %v711 = vld [vmem:[#allocation13 + $0x48] sm:$0xf]
    %v712 = vld [vmem:[#allocation13 + $0x4c] sm:$0xf]
    %v713 = vld [vmem:[#allocation13 + $0x50] sm:$0xf]
    %v714 = vld [vmem:[#allocation13 + $0x54] sm:$0xf]
    %v715 = vld [vmem:[#allocation13 + $0x58] sm:$0xf]
    %v716 = vld [vmem:[#allocation13 + $0x5c] sm:$0xf]
    %v717 = vld [vmem:[#allocation13 + $0x60] sm:$0xf]
    %v718 = vld [vmem:[#allocation13 + $0x64] sm:$0xf]
    %v719 = vld [vmem:[#allocation13 + $0x68] sm:$0xf]
    %v720 = vld [vmem:[#allocation13 + $0x6c] sm:$0xf]
    %v721 = vld [vmem:[#allocation13 + $0x70] sm:$0xf]
    %v722 = vld [vmem:[#allocation13 + $0x74] sm:$0xf]
    %v723 = vld [vmem:[#allocation13 + $0x78] sm:$0xf]
    %v724 = vld [vmem:[#allocation13 + $0x7c] sm:$0xf]
    %v725 = vld [vmem:[#allocation13 + $0x80] sm:$0xf]
    %v726 = vld [vmem:[#allocation13 + $0x84] sm:$0xf]
    %v727 = vld [vmem:[#allocation13 + $0x88] sm:$0xf]
    %v728 = vld [vmem:[#allocation13 + $0x8c] sm:$0xf]
    %v729 = vld [vmem:[#allocation13 + $0x90] sm:$0xf]
    %v730 = vld [vmem:[#allocation13 + $0x94] sm:$0xf]
    %v731 = vld [vmem:[#allocation13 + $0x98] sm:$0xf]
    %v732 = vld [vmem:[#allocation13 + $0x9c] sm:$0xf]
    %v733 = vld [vmem:[#allocation13 + $0xa0] sm:$0xf]
    %v734 = vld [vmem:[#allocation13 + $0xa4] sm:$0xf]
    %v735 = vld [vmem:[#allocation13 + $0xa8] sm:$0xf]
    %v736 = vld [vmem:[#allocation13 + $0xac] sm:$0xf]
    %v737 = vld [vmem:[#allocation13 + $0xb0] sm:$0xf]
    %v738 = vld [vmem:[#allocation13 + $0xb4] sm:$0xf]
    %v739 = vld [vmem:[#allocation13 + $0xb8] sm:$0xf]
    %v740 = vld [vmem:[#allocation13 + $0xbc] sm:$0xf]
    %v741 = vld [vmem:[#allocation13 + $0xc0] sm:$0xf]
    %v742 = vld [vmem:[#allocation13 + $0xc4] sm:$0xf]
    %v743 = vld [vmem:[#allocation13 + $0xc8] sm:$0xf]
    %v744 = vld [vmem:[#allocation13 + $0xcc] sm:$0xf]
    %v745 = vld [vmem:[#allocation13 + $0xd0] sm:$0xf]
    %v746 = vld [vmem:[#allocation13 + $0xd4] sm:$0xf]
    %v747 = vld [vmem:[#allocation13 + $0xd8] sm:$0xf]
    %v748 = vld [vmem:[#allocation13 + $0xdc] sm:$0xf]
    %v749 = vld [vmem:[#allocation13 + $0xe0] sm:$0xf]
    %v750 = vld [vmem:[#allocation13 + $0xe4] sm:$0xf]
    %v751 = vld [vmem:[#allocation13 + $0xe8] sm:$0xf]
    %v752 = vld [vmem:[#allocation13 + $0xec] sm:$0xf]
    %v753 = vld [vmem:[#allocation13 + $0xf0] sm:$0xf]
    %v754 = vld [vmem:[#allocation13 + $0xf4] sm:$0xf]
    %v755 = vld [vmem:[#allocation13 + $0xf8] sm:$0xf]
    %v756 = vld [vmem:[#allocation13 + $0xfc] sm:$0xf]
    %v821 = vunpack.c.l.b16 %v693
    %v822 = vunpack.c.l.b16 %v694
    %v823 = vunpack.c.l.b16 %v695
    %v824 = vunpack.c.l.b16 %v696
    %v825 = vunpack.c.l.b16 %v697
    %v826 = vunpack.c.l.b16 %v698
    %v827 = vunpack.c.l.b16 %v699
    %v828 = vunpack.c.l.b16 %v700
    %v829 = vunpack.c.l.b16 %v701
    %v830 = vunpack.c.l.b16 %v702
    %v831 = vunpack.c.l.b16 %v703
    %v832 = vunpack.c.l.b16 %v704
    %v833 = vunpack.c.l.b16 %v705
    %v834 = vunpack.c.l.b16 %v706
    %v835 = vunpack.c.l.b16 %v707
    %v836 = vunpack.c.l.b16 %v708
    %v837 = vunpack.c.l.b16 %v709
    %v838 = vunpack.c.l.b16 %v710
    %v839 = vunpack.c.l.b16 %v711
    %v840 = vunpack.c.l.b16 %v712
    %v841 = vunpack.c.l.b16 %v713
    %v842 = vunpack.c.l.b16 %v714
    %v843 = vunpack.c.l.b16 %v715
    %v844 = vunpack.c.l.b16 %v716
    %v845 = vunpack.c.l.b16 %v717
    %v846 = vunpack.c.l.b16 %v718
    %v847 = vunpack.c.l.b16 %v719
    %v848 = vunpack.c.l.b16 %v720
    %v849 = vunpack.c.l.b16 %v721
    %v850 = vunpack.c.l.b16 %v722
    %v851 = vunpack.c.l.b16 %v723
    %v852 = vunpack.c.l.b16 %v724
    %v853 = vunpack.c.l.b16 %v725
    %v854 = vunpack.c.l.b16 %v726
    %v855 = vunpack.c.l.b16 %v727
    %v856 = vunpack.c.l.b16 %v728
    %v857 = vunpack.c.l.b16 %v729
    %v858 = vunpack.c.l.b16 %v730
    %v859 = vunpack.c.l.b16 %v731
    %v860 = vunpack.c.l.b16 %v732
    %v861 = vunpack.c.l.b16 %v733
    %v862 = vunpack.c.l.b16 %v734
    %v863 = vunpack.c.l.b16 %v735
    %v864 = vunpack.c.l.b16 %v736
    %v865 = vunpack.c.l.b16 %v737
    %v866 = vunpack.c.l.b16 %v738
    %v867 = vunpack.c.l.b16 %v739
    %v868 = vunpack.c.l.b16 %v740
    %v869 = vunpack.c.l.b16 %v741
    %v870 = vunpack.c.l.b16 %v742
    %v871 = vunpack.c.l.b16 %v743
    %v872 = vunpack.c.l.b16 %v744
    %v873 = vunpack.c.l.b16 %v745
    %v874 = vunpack.c.l.b16 %v746
    %v875 = vunpack.c.l.b16 %v747
    %v876 = vunpack.c.l.b16 %v748
    %v877 = vunpack.c.l.b16 %v749
    %v878 = vunpack.c.l.b16 %v750
    %v879 = vunpack.c.l.b16 %v751
    %v880 = vunpack.c.l.b16 %v752
    %v881 = vunpack.c.l.b16 %v753
    %v882 = vunpack.c.l.b16 %v754
    %v883 = vunpack.c.l.b16 %v755
    %v884 = vunpack.c.l.b16 %v756
    %v885 = vpack.c.b16 %v822, %v821
    %v886 = vpack.c.b16 %v824, %v823
    %v887 = vpack.c.b16 %v826, %v825
    %v888 = vpack.c.b16 %v828, %v827
    %v889 = vpack.c.b16 %v830, %v829
    %v890 = vpack.c.b16 %v832, %v831
    %v891 = vpack.c.b16 %v834, %v833
    %v892 = vpack.c.b16 %v836, %v835
    %v893 = vpack.c.b16 %v838, %v837
    %v894 = vpack.c.b16 %v840, %v839
    %v895 = vpack.c.b16 %v842, %v841
    %v896 = vpack.c.b16 %v844, %v843
    %v897 = vpack.c.b16 %v846, %v845
    %v898 = vpack.c.b16 %v848, %v847
    %v899 = vpack.c.b16 %v850, %v849
    %v900 = vpack.c.b16 %v852, %v851
    %v901 = vpack.c.b16 %v854, %v853
    %v902 = vpack.c.b16 %v856, %v855
    %v903 = vpack.c.b16 %v858, %v857
    %v904 = vpack.c.b16 %v860, %v859
    %v905 = vpack.c.b16 %v862, %v861
    %v906 = vpack.c.b16 %v864, %v863
    %v907 = vpack.c.b16 %v866, %v865
    %v908 = vpack.c.b16 %v868, %v867
    %v909 = vpack.c.b16 %v870, %v869
    %v910 = vpack.c.b16 %v872, %v871
    %v911 = vpack.c.b16 %v874, %v873
    %v912 = vpack.c.b16 %v876, %v875
    %v913 = vpack.c.b16 %v878, %v877
    %v914 = vpack.c.b16 %v880, %v879
    %v915 = vpack.c.b16 %v882, %v881
    %v916 = vpack.c.b16 %v884, %v883
    %949 = vmatprep.subr.bf16.mxu0 0
    %950 = vmatpush1.bf16.msra.mxu0 %v885
    %951 = vmatprep.subr.bf16.mxu0 0
    %952 = vmatpush1.bf16.msra.mxu0 %v886
    %953 = vmatprep.subr.bf16.mxu0 0
    %954 = vmatpush1.bf16.msra.mxu0 %v887
    %955 = vmatprep.subr.bf16.mxu0 0
    %956 = vmatpush1.bf16.msra.mxu0 %v888
    %957 = vmatprep.subr.bf16.mxu0 0
    %958 = vmatpush1.bf16.msra.mxu0 %v889
    %959 = vmatprep.subr.bf16.mxu0 0
    %960 = vmatpush1.bf16.msra.mxu0 %v890
    %961 = vmatprep.subr.bf16.mxu0 0
    %962 = vmatpush1.bf16.msra.mxu0 %v891
    %963 = vmatprep.subr.bf16.mxu0 0
    %964 = vmatpush1.bf16.msra.mxu0 %v892
    %965 = vmatprep.subr.bf16.mxu0 0
    %966 = vmatpush1.bf16.msra.mxu0 %v893
    %967 = vmatprep.subr.bf16.mxu0 0
    %968 = vmatpush1.bf16.msra.mxu0 %v894
    %969 = vmatprep.subr.bf16.mxu0 0
    %970 = vmatpush1.bf16.msra.mxu0 %v895
    %971 = vmatprep.subr.bf16.mxu0 0
    %972 = vmatpush1.bf16.msra.mxu0 %v896
    %973 = vmatprep.subr.bf16.mxu0 0
    %974 = vmatpush1.bf16.msra.mxu0 %v897
    %975 = vmatprep.subr.bf16.mxu0 0
    %976 = vmatpush1.bf16.msra.mxu0 %v898
    %977 = vmatprep.subr.bf16.mxu0 0
    %978 = vmatpush1.bf16.msra.mxu0 %v899
    %979 = vmatprep.subr.bf16.mxu0 0
    %980 = vmatpush1.bf16.msra.mxu0 %v900
    %981 = vmatprep.mubr.bf16.mxu0 %v688
    %982 = vmatmul.mubr.bf16.gmra.mrb[0].mxu0 %v687
    %v983 = vpop.f32.mrb[0].mxu0
    %v984 = vadd.f32 0.0, %v983
    %v985 = vpop.f32.mrb[0].mxu0
    %v986 = vpop.f32.mrb[0].mxu0
    %v987 = vadd.f32 0.0, %v986
    %v988 = vpop.f32.mrb[0].mxu0
    %989 = vdwg.mxu0
    %990 = vmatprep.subr.bf16.mxu0 0
    %991 = vmatpush1.bf16.msra.mxu0 %v901
    %992 = vmatprep.subr.bf16.mxu0 0
    %993 = vmatpush1.bf16.msra.mxu0 %v902
    %994 = vmatprep.subr.bf16.mxu0 0
    %995 = vmatpush1.bf16.msra.mxu0 %v903
    %996 = vmatprep.subr.bf16.mxu0 0
    %997 = vmatpush1.bf16.msra.mxu0 %v904
    %998 = vmatprep.subr.bf16.mxu0 0
    %999 = vmatpush1.bf16.msra.mxu0 %v905
    %1000 = vmatprep.subr.bf16.mxu0 0
    %1001 = vmatpush1.bf16.msra.mxu0 %v906
    %1002 = vmatprep.subr.bf16.mxu0 0
    %1003 = vmatpush1.bf16.msra.mxu0 %v907
    %1004 = vmatprep.subr.bf16.mxu0 0
    %1005 = vmatpush1.bf16.msra.mxu0 %v908
    %1006 = vmatprep.subr.bf16.mxu0 0
    %1007 = vmatpush1.bf16.msra.mxu0 %v909
    %1008 = vmatprep.subr.bf16.mxu0 0
    %1009 = vmatpush1.bf16.msra.mxu0 %v910
    %1010 = vmatprep.subr.bf16.mxu0 0
    %1011 = vmatpush1.bf16.msra.mxu0 %v911
    %1012 = vmatprep.subr.bf16.mxu0 0
    %1013 = vmatpush1.bf16.msra.mxu0 %v912
    %1014 = vmatprep.subr.bf16.mxu0 0
    %1015 = vmatpush1.bf16.msra.mxu0 %v913
    %1016 = vmatprep.subr.bf16.mxu0 0
    %1017 = vmatpush1.bf16.msra.mxu0 %v914
    %1018 = vmatprep.subr.bf16.mxu0 0
    %1019 = vmatpush1.bf16.msra.mxu0 %v915
    %1020 = vmatprep.subr.bf16.mxu0 0
    %1021 = vmatpush1.bf16.msra.mxu0 %v916
    %1022 = vmatprep.mubr.bf16.mxu0 %v690
    %1023 = vmatmul.mubr.bf16.gmra.mrb[0].mxu0 %v689
    %v1024 = vpop.f32.mrb[0].mxu0
    %v1025 = vadd.f32 %v984, %v1024
    %v1026 = vpop.f32.mrb[0].mxu0
    %v1027 = vpop.f32.mrb[0].mxu0
    %v1028 = vadd.f32 %v987, %v1027
    %v1029 = vpop.f32.mrb[0].mxu0
    %1030 = vdwg.mxu0
    %v1031 = vadd.f32 %v691, %v1025
    %v1032 = vadd.f32 %v692, %v1028
    %1033 = vst [vmem:[#allocation2] sm:$0xff] %v1031
    %1034 = vst [vmem:[#allocation2 + $0x8] sm:$0xff] %v1032
    %p1035 = scmp.eq.s32.totalorder 0, 0
    %p1036 = pnand %p1035, %p122
    %p1037 = pneg %p1036
    // Predicated region
    $region62: #{tpu_custom_call.1} parent=1 // pred_check
      _
    $region63: #{tpu_custom_call.1} parent=1 // pred_check_branch
      %1039 = sbr.rel (%p1036) target = $region65
    $region64: #{tpu_custom_call.1} parent=1 // pred_region
      %v1040 = vld [vmem:[#allocation7] sm:$0x1]
      %v1041 = vunpack.c.l.bf16 %v1040
      %v1042 = vsel %vm671, %v1041, 0.0
      %v1043 = vld [vmem:[#allocation3] sm:$0x1]
      %v1044 = vld [vmem:[#allocation2] sm:$0x1]
      %1046 = vrot.lane.b32.xlu0 %v1042, 9
      %v1047 = vpop.permute.xlu0 %1046
      %v1049 = vmul.f32 %v1043, %v1047
      %1051 = vrot.lane.b32.xlu0 %v1049, 119
      %v1052 = vpop.permute.xlu0 %1051
      %v1054 = vsub.f32 %v1044, %v1052
      %vm1055 = vcmask 0
      %1056 = vst.msk [vmem:[#allocation2] sm:$0x1] %vm1055, %v1054
    $region65: #{tpu_custom_call.1} parent=1 // pred_fallthru
      _
    // Predicated region
    $region66: #{tpu_custom_call.1} parent=1 // pred_check
      %p1057 = pneg %p122
    $region67: #{tpu_custom_call.1} parent=1 // pred_check_branch
      %1059 = sbr.rel (%p1057) target = $region69
    $region68: #{tpu_custom_call.1} parent=1 // pred_region
      %v1060 = vld [vmem:[#allocation3] sm:$0xff]
      %v1061 = vld [vmem:[#allocation3 + $0x8] sm:$0xff]
      %v1062 = vld [vmem:[#allocation2] sm:$0xff]
      %v1063 = vld [vmem:[#allocation2 + $0x8] sm:$0xff]
      %vm1064 = vcmp.gt.f32.partialorder %v1062, 0.0
      %vm1065 = vcmp.gt.f32.partialorder %v1063, 0.0
      %v1066 = vsel %vm1064, 1, 0
      %v1067 = vsel %vm1065, 1, 0
      %v1068 = vcvt.s32.f32 %v1066
      %v1069 = vcvt.s32.f32 %v1067
      %1070 = vadd.xlane.f32.xlu0 %v1068
      %v1071 = vpop.xlane.xlu0 %1070
      %1072 = vadd.xlane.f32.xlu0 %v1069
      %v1073 = vpop.xlane.xlu0 %1072
      %v1074 = vsub.f32 25.0, %v1071
      %v1075 = vsub.f32 25.0, %v1073
      %v1076 = vrcp.pop 25.0
      %v1077 = vmul.f32 %v1074, %v1076
      %v1078 = vmul.f32 %v1075, %v1076
      %v1079 = vmax.f32 %v1077, 0.0
      %v1080 = vmax.f32 %v1078, 0.0
      %v1081 = vmin.f32 %v1079, 1.0
      %v1082 = vmin.f32 %v1080, 1.0
      %v1083 = vmul.f32 %v1071, %v1076
      %v1084 = vmul.f32 %v1073, %v1076
      %v1085 = vmax.f32 %v1083, 0.0
      %v1086 = vmax.f32 %v1084, 0.0
      %v1087 = vmin.f32 %v1085, 1.0
      %v1088 = vmin.f32 %v1086, 1.0
      %v1089 = vadd.f32 %v1081, %v1087
      %v1090 = vadd.f32 %v1082, %v1088
      %v1091 = vmul.f32 %v1060, 0.8
      %v1092 = vmul.f32 %v1061, 0.8
      %v1093 = vmul.f32 %v1091, %v1089
      %v1094 = vmul.f32 %v1092, %v1090
      %v1095 = vmax.f32 %v1060, 0.0
      %v1096 = vmax.f32 %v1061, 0.0
      %v1097 = vmin.f32 %v1095, 1.0
      %v1098 = vmin.f32 %v1096, 1.0
      %vm1099 = vcmp.gt.f32.partialorder %v1097, 0.999
      %vm1100 = vcmp.gt.f32.partialorder %v1098, 0.999
      %1103 = vrot.lane.b32.xlu0 %v1093, 127
      %v1104 = vpop.permute.xlu0 %1103
      %1105 = vrot.lane.b32.xlu0 %v1094, 127
      %v1106 = vpop.permute.xlu0 %1105
      %v1109 = vsel %vm1099, %v1104, 0.0
      %v1110 = vsel %vm1100, %v1106, 0.0
      %1112 = vset.pattern.permute.xlu0 7
      %1113 = vperm.xlu0 %1112, %v1109
      %v1114 = vpop.permute.xlu0 %1113
      %1117 = vset.pattern.permute.xlu0 7
      %1118 = vperm.xlu0 %1117, %v1110
      %v1119 = vpop.permute.xlu0 %1118
      %v1121 = vadd.f32 %v1060, %v1114
      %v1122 = vadd.f32 %v1061, %v1119
      %v1123 = vmax.f32 %v1121, 0.0
      %v1124 = vmax.f32 %v1122, 0.0
      %v1125 = vmin.f32 %v1123, 1.0
      %v1126 = vmin.f32 %v1124, 1.0
      %1129 = vrot.lane.b32.xlu0 %v1125, 124
      %v1130 = vpop.permute.xlu0 %1129
      %1131 = vrot.lane.b32.xlu0 %v1126, 124
      %v1132 = vpop.permute.xlu0 %1131
      %vm1135 = vcmask 23552
      %1136 = vst.msk [vmem:[%s7] sm:$0xff] %vm1135, %v1130
      %1137 = vst.msk [vmem:[%s7 + $0x8] sm:$0xff] %vm1135, %v1132
    $region69: #{tpu_custom_call.1} parent=1 // pred_fallthru
      _
    // Predicated region
    $region70: #{tpu_custom_call.1} parent=1 // pred_check
      _
    $region71: #{tpu_custom_call.1} parent=1 // pred_check_branch
      %1139 = sbr.rel (0) target = $region73
    $region72: #{tpu_custom_call.1} parent=1 // pred_region
      _
    $region73: #{tpu_custom_call.1} parent=1 // pred_fallthru
      _
    // Predicated region
    $region74: #{tpu_custom_call.1} parent=1 // pred_check
      _
    $region75: #{tpu_custom_call.1} parent=1 // pred_check_branch
      %1141 = sbr.rel (0) target = $region77
    $region76: #{tpu_custom_call.1} parent=1 // pred_region
      _
    $region77: #{tpu_custom_call.1} parent=1 // pred_fallthru
      _
    %1142 = vsyncpa [#allocation4], 1
    %1143 = vsyncpa [#allocation6], 1
    %1144 = vsyncpa [#allocation9], 1
    %1145 = vsyncpa [#allocation12], 1

</llo_original>
